<compile_context>
chip_gen: v7x
topology: tpu7x:2x2x1
jax: 0.10.0
libtpu: 0.0.40
codegen_flags: <defaults>
</compile_context>

<pallas_src>
import functools

import jax
import jax.numpy as jnp
from jax.experimental import pallas as pl
from jax.experimental.pallas import tpu as pltpu


def _round_up(x, m):
    return (x + m - 1) // m * m


def cbl_kernel(x_ref, w_ref, shift_ref, o_ref):
    """Fused conv(KHxKW, stride=1) + folded-BN shift + LeakyReLU(0.1).

    x_ref:     (1, 1, TOH+KH-1, Wp, Cin)  one haloed row tile (padded NHWC)
    w_ref:     (KH, KW, Cin, Cout_pad)    BN scale already folded in
    shift_ref: (1, Cout_pad)              f32 per-channel shift
    o_ref:     (1, TOH, OW, Cout_pad)     lane-dense (Cout_pad % 128 == 0)
    """
    _, _, _, _, cin = x_ref.shape
    kh_dim, kw_dim, _, cout_pad = w_ref.shape
    _, toh, ow, _ = o_ref.shape

    x = x_ref[0, 0]                                  # (TOH+KH-1, Wp, Cin)

    acc = jnp.zeros((toh * ow, cout_pad), dtype=jnp.float32)
    # Convolution as a sum of shifted-patch matmuls (one MXU matmul per tap).
    for kh in range(kh_dim):
        for kw in range(kw_dim):
            patch = x[kh:kh + toh, kw:kw + ow, :].reshape(toh * ow, cin)
            acc = acc + jnp.dot(patch, w_ref[kh, kw],
                                preferred_element_type=jnp.float32)

    # BN scale is folded into the weights; only the per-channel shift remains.
    y = acc + shift_ref[0]
    # LeakyReLU(0.1), f32 epilogue (v5e has no bf16 VPU path).
    y = jnp.where(y > 0, y, 0.1 * y)
    o_ref[0] = y.reshape(toh, ow, cout_pad).astype(o_ref.dtype)


@functools.partial(jax.jit,
                   static_argnames=("padding", "eps", "rows_per_tile",
                                    "compute_dtype"))
def cbl_forward(x_nchw, weight_oihw, gamma, beta, running_mean, running_var,
                padding=1, eps=1e-4, rows_per_tile=None,
                compute_dtype=jnp.float32):
    """CBL forward.  x_nchw: (N, Cin, H, W) -> (N, Cout, OH, OW)."""
    n, cin, h, w = x_nchw.shape
    cout, _, kh, kw = weight_oihw.shape
    oh = h + 2 * padding - kh + 1
    ow = w + 2 * padding - kw + 1
    wp = w + 2 * padding
    out_dtype = x_nchw.dtype

    # ---- tile sizing --------------------------------------------------------
    cout_pad = _round_up(cout, 128)                 # lane-dense output stores
    if rows_per_tile is None:
        in_itemsize = jnp.dtype(compute_dtype).itemsize
        in_row = wp * cin * in_itemsize
        out_row = ow * cout_pad * 4
        toh = (4 << 20) // (2 * (in_row + out_row))  # ~4 MiB double-buffered
        toh = max(8, min(int(toh), 128)) // 8 * 8
        toh = min(toh, oh)
    else:
        toh = min(int(rows_per_tile), oh)
    n_tiles = pl.cdiv(oh, toh)
    oh_pad = n_tiles * toh

    # ---- glue: NCHW -> NHWC, pad, build haloed row tiles --------------------
    x = jnp.transpose(x_nchw, (0, 2, 3, 1))          # NHWC
    xp = jnp.pad(x, ((0, 0),
                     (padding, padding + (oh_pad - oh)),
                     (padding, padding),
                     (0, 0)))
    # (N, n_tiles, TOH+KH-1, Wp, Cin): overlapping (halo) row tiles so the
    # kernel BlockSpecs stay plain Blocked; the pad is fused into this copy.
    x_tiles = jnp.stack(
        [xp[:, t * toh: t * toh + toh + kh - 1] for t in range(n_tiles)],
        axis=1).astype(compute_dtype)

    # ---- fold BN into the conv weights --------------------------------------
    scale = gamma * jax.lax.rsqrt(running_var + eps)            # (Cout,)
    shift = beta - running_mean * scale                         # (Cout,)
    w_hwio = jnp.transpose(weight_oihw, (2, 3, 1, 0)) * scale   # (KH,KW,Cin,Cout)
    w_hwio = jnp.pad(w_hwio, ((0, 0), (0, 0), (0, 0), (0, cout_pad - cout)))
    w_hwio = w_hwio.astype(compute_dtype)
    shift_p = jnp.pad(shift, (0, cout_pad - cout)).reshape(1, cout_pad)
    shift_p = shift_p.astype(jnp.float32)

    out_nhwc = pl.pallas_call(
        cbl_kernel,
        out_shape=jax.ShapeDtypeStruct((n, oh_pad, ow, cout_pad), out_dtype),
        grid=(n, n_tiles),
        in_specs=[
            pl.BlockSpec((1, 1, toh + kh - 1, wp, cin),
                         lambda b, t: (b, t, 0, 0, 0)),
            pl.BlockSpec((kh, kw, cin, cout_pad), lambda b, t: (0, 0, 0, 0)),
            pl.BlockSpec((1, cout_pad), lambda b, t: (0, 0)),
        ],
        out_specs=pl.BlockSpec((1, toh, ow, cout_pad),
                               lambda b, t: (b, t, 0, 0)),
        compiler_params=pltpu.CompilerParams(
            dimension_semantics=("parallel", "parallel"),
            vmem_limit_bytes=32 * 1024 * 1024),
    )(x_tiles, w_hwio, shift_p)

    # Drop the OH / Cout padding and return NCHW (slice + transpose fuse into
    # one XLA copy).
    return jnp.transpose(out_nhwc[:, :oh, :, :cout], (0, 3, 1, 2))


def _reference(x_nchw, weight_oihw, gamma, beta, mean, var, padding=1, eps=1e-4):
    """Plain-JAX reference (conv + eval-mode BN + LeakyReLU) for validation."""
    y = jax.lax.conv_general_dilated(
        x_nchw, weight_oihw,
        window_strides=(1, 1),
        padding=((padding, padding), (padding, padding)),
        dimension_numbers=("NCHW", "OIHW", "NCHW"),
        precision=jax.lax.Precision.HIGHEST)
    s = (gamma / jnp.sqrt(var + eps)).reshape(1, -1, 1, 1)
    b = (beta - mean * gamma / jnp.sqrt(var + eps)).reshape(1, -1, 1, 1)
    y = y * s + b
    return jnp.where(y > 0, y, 0.1 * y)


if __name__ == "__main__":
    key = jax.random.PRNGKey(0)
    k_x, k_w = jax.random.split(key)

    # Small shapes consistent with CBL(inplanes=4, planes=8, kernel_size=3,
    # stride=1, padding=1).
    N, Cin, H, W = 2, 4, 16, 16
    Cout, KH, KW = 8, 3, 3

    x = jax.random.normal(k_x, (N, Cin, H, W), dtype=jnp.float32)
    weight = 0.1 * jax.random.normal(k_w, (Cout, Cin, KH, KW), dtype=jnp.float32)

    # Deterministic (non-trivial) BN parameters / running statistics.
    gamma = 1.0 + 0.1 * jnp.arange(Cout, dtype=jnp.float32)
    beta = 0.05 * jnp.arange(Cout, dtype=jnp.float32)
    running_mean = 0.01 * jnp.arange(Cout, dtype=jnp.float32)
    running_var = 1.0 + 0.02 * jnp.arange(Cout, dtype=jnp.float32)

    ref = _reference(x, weight, gamma, beta, running_mean, running_var,
                     padding=1, eps=1e-4)

    # f32 path; 6-row tiles exercise multi-tile + remainder handling (OH=16).
    out = cbl_forward(x, weight, gamma, beta, running_mean, running_var,
                      padding=1, eps=1e-4, rows_per_tile=6)
    out = jax.block_until_ready(out)
    assert out.shape == (N, Cout, H, W)
    assert jnp.allclose(out, ref, atol=1e-3, rtol=1e-3)

    # bf16 MXU path (f32 accumulate + f32 epilogue), auto row tiling.
    out_bf16 = cbl_forward(x, weight, gamma, beta, running_mean, running_var,
                           padding=1, eps=1e-4, compute_dtype=jnp.bfloat16)
    out_bf16 = jax.block_until_ready(out_bf16)
    assert out_bf16.shape == (N, Cout, H, W)
    assert jnp.allclose(out_bf16, ref, atol=5e-2, rtol=5e-2)

    print("KERNEL_OK")
</pallas_src>

<mosaic_0001>
module attributes {stable_mosaic.version = 11 : i64} {
  func.func @cbl_kernel(%arg0: i32, %arg1: i32, %arg2: memref<1x1x8x18x4xf32, #tpu.memory_space<vmem>>, %arg3: memref<3x3x4x128xf32, #tpu.memory_space<vmem>>, %arg4: memref<1x128xf32, #tpu.memory_space<vmem>>, %arg5: memref<1x6x16x128xf32, #tpu.memory_space<vmem>>) attributes {dimension_semantics = [#tpu.dimension_semantics<parallel>, #tpu.dimension_semantics<parallel>], iteration_bounds = array<i64: 2, 3>, scalar_prefetch = 0 : i64, scratch_operands = 0 : i64, tpu.core_type = #tpu.core_type<tc>, window_params = [{transform_indices = @transform_0, window_bounds = array<i64: 1, 1, 8, 18, 4>}, {pipeline_mode = #tpu.pipeline_mode<synchronous>, transform_indices = @transform_1, window_bounds = array<i64: 3, 3, 4, 128>}, {pipeline_mode = #tpu.pipeline_mode<synchronous>, transform_indices = @transform_2, window_bounds = array<i64: 1, 128>}, {transform_indices = @transform_3, window_bounds = array<i64: 1, 6, 16, 128>}]} {
    %c0 = arith.constant 0 : index
    %c0_0 = arith.constant 0 : index
    %c0_1 = arith.constant 0 : index
    %c0_2 = arith.constant 0 : index
    %c0_3 = arith.constant 0 : index
    %0 = vector.load %arg2[%c0, %c0_0, %c0_1, %c0_2, %c0_3] : memref<1x1x8x18x4xf32, #tpu.memory_space<vmem>>, vector<1x1x8x18x4xf32>
    %1 = vector.shape_cast %0 : vector<1x1x8x18x4xf32> to vector<8x18x4xf32>
    %cst = arith.constant 0.000000e+00 : f32
    %2 = vector.broadcast %cst : f32 to vector<96x128xf32>
    %3 = vector.extract_strided_slice %1 {offsets = [0, 0, 0], sizes = [6, 16, 4], strides = [1, 1, 1]} : vector<8x18x4xf32> to vector<6x16x4xf32>
    %4 = vector.shape_cast %3 : vector<6x16x4xf32> to vector<96x4xf32>
    %c0_4 = arith.constant 0 : index
    %c0_5 = arith.constant 0 : index
    %c0_6 = arith.constant 0 : index
    %c0_7 = arith.constant 0 : index
    %5 = vector.load %arg3[%c0_4, %c0_5, %c0_6, %c0_7] : memref<3x3x4x128xf32, #tpu.memory_space<vmem>>, vector<1x1x4x128xf32>
    %6 = vector.shape_cast %5 : vector<1x1x4x128xf32> to vector<4x128xf32>
    %cst_8 = arith.constant dense<0.000000e+00> : vector<96x128xf32>
    %7 = tpu.matmul %4, %6, %cst_8 {dimension_numbers = #tpu.dot_dimension_numbers<[1], [0], [0], [1], [0, 0, 1, 1], [], []>} : vector<96x4xf32>, vector<4x128xf32>, vector<96x128xf32> -> vector<96x128xf32>
    %8 = arith.addf %2, %7 : vector<96x128xf32>
    %9 = vector.extract_strided_slice %1 {offsets = [0, 1, 0], sizes = [6, 16, 4], strides = [1, 1, 1]} : vector<8x18x4xf32> to vector<6x16x4xf32>
    %10 = vector.shape_cast %9 : vector<6x16x4xf32> to vector<96x4xf32>
    %c0_9 = arith.constant 0 : index
    %c1 = arith.constant 1 : index
    %c0_10 = arith.constant 0 : index
    %c0_11 = arith.constant 0 : index
    %11 = vector.load %arg3[%c0_9, %c1, %c0_10, %c0_11] : memref<3x3x4x128xf32, #tpu.memory_space<vmem>>, vector<1x1x4x128xf32>
    %12 = vector.shape_cast %11 : vector<1x1x4x128xf32> to vector<4x128xf32>
    %cst_12 = arith.constant dense<0.000000e+00> : vector<96x128xf32>
    %13 = tpu.matmul %10, %12, %cst_12 {dimension_numbers = #tpu.dot_dimension_numbers<[1], [0], [0], [1], [0, 0, 1, 1], [], []>} : vector<96x4xf32>, vector<4x128xf32>, vector<96x128xf32> -> vector<96x128xf32>
    %14 = arith.addf %8, %13 : vector<96x128xf32>
    %15 = vector.extract_strided_slice %1 {offsets = [0, 2, 0], sizes = [6, 16, 4], strides = [1, 1, 1]} : vector<8x18x4xf32> to vector<6x16x4xf32>
    %16 = vector.shape_cast %15 : vector<6x16x4xf32> to vector<96x4xf32>
    %c0_13 = arith.constant 0 : index
    %c2 = arith.constant 2 : index
    %c0_14 = arith.constant 0 : index
    %c0_15 = arith.constant 0 : index
    %17 = vector.load %arg3[%c0_13, %c2, %c0_14, %c0_15] : memref<3x3x4x128xf32, #tpu.memory_space<vmem>>, vector<1x1x4x128xf32>
    %18 = vector.shape_cast %17 : vector<1x1x4x128xf32> to vector<4x128xf32>
    %cst_16 = arith.constant dense<0.000000e+00> : vector<96x128xf32>
    %19 = tpu.matmul %16, %18, %cst_16 {dimension_numbers = #tpu.dot_dimension_numbers<[1], [0], [0], [1], [0, 0, 1, 1], [], []>} : vector<96x4xf32>, vector<4x128xf32>, vector<96x128xf32> -> vector<96x128xf32>
    %20 = arith.addf %14, %19 : vector<96x128xf32>
    %21 = vector.extract_strided_slice %1 {offsets = [1, 0, 0], sizes = [6, 16, 4], strides = [1, 1, 1]} : vector<8x18x4xf32> to vector<6x16x4xf32>
    %22 = vector.shape_cast %21 : vector<6x16x4xf32> to vector<96x4xf32>
    %c1_17 = arith.constant 1 : index
    %c0_18 = arith.constant 0 : index
    %c0_19 = arith.constant 0 : index
    %c0_20 = arith.constant 0 : index
    %23 = vector.load %arg3[%c1_17, %c0_18, %c0_19, %c0_20] : memref<3x3x4x128xf32, #tpu.memory_space<vmem>>, vector<1x1x4x128xf32>
    %24 = vector.shape_cast %23 : vector<1x1x4x128xf32> to vector<4x128xf32>
    %cst_21 = arith.constant dense<0.000000e+00> : vector<96x128xf32>
    %25 = tpu.matmul %22, %24, %cst_21 {dimension_numbers = #tpu.dot_dimension_numbers<[1], [0], [0], [1], [0, 0, 1, 1], [], []>} : vector<96x4xf32>, vector<4x128xf32>, vector<96x128xf32> -> vector<96x128xf32>
    %26 = arith.addf %20, %25 : vector<96x128xf32>
    %27 = vector.extract_strided_slice %1 {offsets = [1, 1, 0], sizes = [6, 16, 4], strides = [1, 1, 1]} : vector<8x18x4xf32> to vector<6x16x4xf32>
    %28 = vector.shape_cast %27 : vector<6x16x4xf32> to vector<96x4xf32>
    %c1_22 = arith.constant 1 : index
    %c1_23 = arith.constant 1 : index
    %c0_24 = arith.constant 0 : index
    %c0_25 = arith.constant 0 : index
    %29 = vector.load %arg3[%c1_22, %c1_23, %c0_24, %c0_25] : memref<3x3x4x128xf32, #tpu.memory_space<vmem>>, vector<1x1x4x128xf32>
    %30 = vector.shape_cast %29 : vector<1x1x4x128xf32> to vector<4x128xf32>
    %cst_26 = arith.constant dense<0.000000e+00> : vector<96x128xf32>
    %31 = tpu.matmul %28, %30, %cst_26 {dimension_numbers = #tpu.dot_dimension_numbers<[1], [0], [0], [1], [0, 0, 1, 1], [], []>} : vector<96x4xf32>, vector<4x128xf32>, vector<96x128xf32> -> vector<96x128xf32>
    %32 = arith.addf %26, %31 : vector<96x128xf32>
    %33 = vector.extract_strided_slice %1 {offsets = [1, 2, 0], sizes = [6, 16, 4], strides = [1, 1, 1]} : vector<8x18x4xf32> to vector<6x16x4xf32>
    %34 = vector.shape_cast %33 : vector<6x16x4xf32> to vector<96x4xf32>
    %c1_27 = arith.constant 1 : index
    %c2_28 = arith.constant 2 : index
    %c0_29 = arith.constant 0 : index
    %c0_30 = arith.constant 0 : index
    %35 = vector.load %arg3[%c1_27, %c2_28, %c0_29, %c0_30] : memref<3x3x4x128xf32, #tpu.memory_space<vmem>>, vector<1x1x4x128xf32>
    %36 = vector.shape_cast %35 : vector<1x1x4x128xf32> to vector<4x128xf32>
    %cst_31 = arith.constant dense<0.000000e+00> : vector<96x128xf32>
    %37 = tpu.matmul %34, %36, %cst_31 {dimension_numbers = #tpu.dot_dimension_numbers<[1], [0], [0], [1], [0, 0, 1, 1], [], []>} : vector<96x4xf32>, vector<4x128xf32>, vector<96x128xf32> -> vector<96x128xf32>
    %38 = arith.addf %32, %37 : vector<96x128xf32>
    %39 = vector.extract_strided_slice %1 {offsets = [2, 0, 0], sizes = [6, 16, 4], strides = [1, 1, 1]} : vector<8x18x4xf32> to vector<6x16x4xf32>
    %40 = vector.shape_cast %39 : vector<6x16x4xf32> to vector<96x4xf32>
    %c2_32 = arith.constant 2 : index
    %c0_33 = arith.constant 0 : index
    %c0_34 = arith.constant 0 : index
    %c0_35 = arith.constant 0 : index
    %41 = vector.load %arg3[%c2_32, %c0_33, %c0_34, %c0_35] : memref<3x3x4x128xf32, #tpu.memory_space<vmem>>, vector<1x1x4x128xf32>
    %42 = vector.shape_cast %41 : vector<1x1x4x128xf32> to vector<4x128xf32>
    %cst_36 = arith.constant dense<0.000000e+00> : vector<96x128xf32>
    %43 = tpu.matmul %40, %42, %cst_36 {dimension_numbers = #tpu.dot_dimension_numbers<[1], [0], [0], [1], [0, 0, 1, 1], [], []>} : vector<96x4xf32>, vector<4x128xf32>, vector<96x128xf32> -> vector<96x128xf32>
    %44 = arith.addf %38, %43 : vector<96x128xf32>
    %45 = vector.extract_strided_slice %1 {offsets = [2, 1, 0], sizes = [6, 16, 4], strides = [1, 1, 1]} : vector<8x18x4xf32> to vector<6x16x4xf32>
    %46 = vector.shape_cast %45 : vector<6x16x4xf32> to vector<96x4xf32>
    %c2_37 = arith.constant 2 : index
    %c1_38 = arith.constant 1 : index
    %c0_39 = arith.constant 0 : index
    %c0_40 = arith.constant 0 : index
    %47 = vector.load %arg3[%c2_37, %c1_38, %c0_39, %c0_40] : memref<3x3x4x128xf32, #tpu.memory_space<vmem>>, vector<1x1x4x128xf32>
    %48 = vector.shape_cast %47 : vector<1x1x4x128xf32> to vector<4x128xf32>
    %cst_41 = arith.constant dense<0.000000e+00> : vector<96x128xf32>
    %49 = tpu.matmul %46, %48, %cst_41 {dimension_numbers = #tpu.dot_dimension_numbers<[1], [0], [0], [1], [0, 0, 1, 1], [], []>} : vector<96x4xf32>, vector<4x128xf32>, vector<96x128xf32> -> vector<96x128xf32>
    %50 = arith.addf %44, %49 : vector<96x128xf32>
    %51 = vector.extract_strided_slice %1 {offsets = [2, 2, 0], sizes = [6, 16, 4], strides = [1, 1, 1]} : vector<8x18x4xf32> to vector<6x16x4xf32>
    %52 = vector.shape_cast %51 : vector<6x16x4xf32> to vector<96x4xf32>
    %c2_42 = arith.constant 2 : index
    %c2_43 = arith.constant 2 : index
    %c0_44 = arith.constant 0 : index
    %c0_45 = arith.constant 0 : index
    %53 = vector.load %arg3[%c2_42, %c2_43, %c0_44, %c0_45] : memref<3x3x4x128xf32, #tpu.memory_space<vmem>>, vector<1x1x4x128xf32>
    %54 = vector.shape_cast %53 : vector<1x1x4x128xf32> to vector<4x128xf32>
    %cst_46 = arith.constant dense<0.000000e+00> : vector<96x128xf32>
    %55 = tpu.matmul %52, %54, %cst_46 {dimension_numbers = #tpu.dot_dimension_numbers<[1], [0], [0], [1], [0, 0, 1, 1], [], []>} : vector<96x4xf32>, vector<4x128xf32>, vector<96x128xf32> -> vector<96x128xf32>
    %56 = arith.addf %50, %55 : vector<96x128xf32>
    %c0_47 = arith.constant 0 : index
    %c0_48 = arith.constant 0 : index
    %57 = vector.load %arg4[%c0_47, %c0_48] : memref<1x128xf32, #tpu.memory_space<vmem>>, vector<1x128xf32>
    %58 = vector.shape_cast %57 : vector<1x128xf32> to vector<128xf32>
    %59 = vector.shape_cast %58 : vector<128xf32> to vector<1x128xf32>
    %60 = vector.broadcast %59 : vector<1x128xf32> to vector<96x128xf32>
    %61 = arith.addf %56, %60 : vector<96x128xf32>
    %cst_49 = arith.constant 0.000000e+00 : f32
    %62 = vector.broadcast %cst_49 : f32 to vector<96x128xf32>
    %63 = arith.cmpf ogt, %61, %62 : vector<96x128xf32>
    %cst_50 = arith.constant 1.000000e-01 : f32
    %64 = vector.broadcast %cst_50 : f32 to vector<96x128xf32>
    %65 = arith.mulf %64, %61 : vector<96x128xf32>
    %66 = arith.select %63, %61, %65 : vector<96x128xi1>, vector<96x128xf32>
    %67 = vector.shape_cast %66 : vector<96x128xf32> to vector<6x16x128xf32>
    %c0_51 = arith.constant 0 : index
    %c0_52 = arith.constant 0 : index
    %c0_53 = arith.constant 0 : index
    %c0_54 = arith.constant 0 : index
    %68 = vector.load %arg5[%c0_51, %c0_52, %c0_53, %c0_54] : memref<1x6x16x128xf32, #tpu.memory_space<vmem>>, vector<1x6x16x128xf32>
    %69 = vector.shape_cast %68 : vector<1x6x16x128xf32> to vector<6x16x128xf32>
    %70 = vector.shape_cast %67 : vector<6x16x128xf32> to vector<1x6x16x128xf32>
    tpu.vector_store %arg5[%c0_51, %c0_52, %c0_53, %c0_54], %70 {strides = array<i32>} : memref<1x6x16x128xf32, #tpu.memory_space<vmem>>, vector<1x6x16x128xf32>,
    return
  }
  func.func @transform_0(%arg0: i32, %arg1: i32) -> (i32, i32, i32, i32, i32) {
    %c0_i32 = arith.constant 0 : i32
    %c0_i32_0 = arith.constant 0 : i32
    %c0_i32_1 = arith.constant 0 : i32
    %c0_i32_2 = arith.constant 0 : i32
    return %arg0, %arg1, %c0_i32, %c0_i32_0, %c0_i32_1 : i32, i32, i32, i32, i32
  }
  func.func @transform_1(%arg0: i32, %arg1: i32) -> (i32, i32, i32, i32) {
    %c0_i32 = arith.constant 0 : i32
    %c0_i32_0 = arith.constant 0 : i32
    %c0_i32_1 = arith.constant 0 : i32
    %c0_i32_2 = arith.constant 0 : i32
    %c0_i32_3 = arith.constant 0 : i32
    return %c0_i32, %c0_i32_0, %c0_i32_1, %c0_i32_2 : i32, i32, i32, i32
  }
  func.func @transform_2(%arg0: i32, %arg1: i32) -> (i32, i32) {
    %c0_i32 = arith.constant 0 : i32
    %c0_i32_0 = arith.constant 0 : i32
    %c0_i32_1 = arith.constant 0 : i32
    return %c0_i32, %c0_i32_0 : i32, i32
  }
  func.func @transform_3(%arg0: i32, %arg1: i32) -> (i32, i32, i32, i32) {
    %c0_i32 = arith.constant 0 : i32
    %c0_i32_0 = arith.constant 0 : i32
    %c0_i32_1 = arith.constant 0 : i32
    return %arg0, %arg1, %c0_i32, %c0_i32_0 : i32, i32, i32, i32
  }
}

</mosaic_0001>

<llo_original>
// kernel: cbl_forward.1
$region0: #{cbl_forward.1}
  #allocation0 [shape = 'u32[]', space=smem, size = 0x4, offset = 0x4, fixed_abs, tag = 'smem constant byte address 0x4 - core index']
  #allocation1 [shape = 'u32[144,128]{1,0:T(1,128)}', space=vmem, size = 0x12000, scoped, tag = 'internal scratch']
  %s0 = inlined_call_operand.vmem [shape: f32[2,3,8,18,4], index: 0, kind: input, shape index: {}]
  %s1 = inlined_call_operand.vmem [shape: f32[3,3,4,128], index: 1, kind: input, shape index: {}]
  %s2 = inlined_call_operand.vmem [shape: f32[1,128], index: 2, kind: input, shape index: {}]
  %s3 = inlined_call_operand.vmem [shape: f32[2,18,16,128], index: 3, kind: output, shape index: {}]
  %s4 = sld [smem:[#allocation0]]
  $region45: #{cbl_forward.1} parent=0
    _
  %s6 = ssub.s32 1, %s4
  %s7 = scalar_select 0, %s6, %s4
  loop: start=0, step=1, limit=8
  $region2: #{cbl_forward.1} parent=0 // loop_pre_header
    _
  $region3: #{cbl_forward.1} parent=0 // loop_header
    %s9 = sphi 0, %s13
    %p10 = scmp.ge.s32.totalorder %s9, 8
    %s16 = sphi 0, %s28
    %s17 = sphi 0, %s24
    %s18 = sphi 0, %s16
    %s19 = sphi 0, %s17
    %s20 = sphi 0, %s18
    %s21 = sphi 0, %s19
    %s33 = sphi 0, %s35
    %s36 = sphi 0, %s33
    %s37 = sphi 0, %s36
    %s53 = sphi 0, %s37
    %s57 = sphi 0, %s57
    %s59 = sphi 0, %s57
    %s60 = sphi 0, %s59
    %s74 = sphi 0, %s60
    %s78 = sphi 0, %s78
    %s80 = sphi 0, %s78
    %s81 = sphi 0, %s80
    %s95 = sphi 0, %s81
    %s103 = sphi 0, %s105
    %s106 = sphi 0, %s103
    %s107 = sphi 0, %s106
    %s123 = sphi 0, %s107
  $region4: #{cbl_forward.1} parent=0 // loop_header_branch
    %12 = sbr.rel (%p10) target = $region8
  $region5: #{cbl_forward.1} parent=0 // loop_body
    %s14 = ssub.s32 %s9, 1
    %s15 = ssub.s32 %s9, 2
    %s22 = sadd.s32 1, %s17
    %p23 = scmp.ge.s32.totalorder %s22, 3
    %s24 = scalar_select %p23, 0, %s22
    %s25 = sadd.s32 1, %s16
    %s26 = scalar_select %p23, %s25, %s16
    %p27 = scmp.ge.s32.totalorder %s26, 2
    %s28 = scalar_select %p27, 0, %s26
    %s29 = ssub.s32 %s16, %s28
    %s30 = ssub.s32 %s17, %s24
    %s31 = sor.u32 %s29, %s30
    %p32 = scmp.eq.s32.totalorder %s31, 0
    %s34 = sadd.s32 %s33, 1
    %s35 = scalar_select %p32, %s33, %s34
    %p38 = pneg %p32
    %p39 = scmp.eq.s32.totalorder %s9, 5
    %p40 = por %p38, %p39
    %p41 = scmp.ne.s32.totalorder %s33, %s36
    %p42 = scmp.eq.s32.totalorder %s9, 0
    %p43 = por %p41, %p42
    %p44 = scmp.ne.s32.totalorder %s33, %s36
    %p45 = scmp.eq.s32.totalorder %s14, 5
    %p46 = por %p44, %p45
    %p47 = scmp.ne.s32.totalorder %s36, %s37
    %p48 = scmp.eq.s32.totalorder %s14, 0
    %p49 = por %p47, %p48
    %p50 = scmp.ne.s32.totalorder %s36, %s37
    %p51 = scmp.eq.s32.totalorder %s15, 5
    %p52 = por %p50, %p51
    %p54 = scmp.ne.s32.totalorder %s37, %s53
    %p55 = scmp.eq.s32.totalorder %s15, 0
    %p56 = por %p54, %p55
    %s58 = sadd.s32 %s57, 1
    %p61 = scmp.eq.s32.totalorder %s9, 5
    %p62 = scmp.ne.s32.totalorder %s57, %s59
    %p63 = scmp.eq.s32.totalorder %s9, 0
    %p64 = por %p62, %p63
    %p65 = scmp.ne.s32.totalorder %s57, %s59
    %p66 = scmp.eq.s32.totalorder %s14, 5
    %p67 = por %p65, %p66
    %p68 = scmp.ne.s32.totalorder %s59, %s60
    %p69 = scmp.eq.s32.totalorder %s14, 0
    %p70 = por %p68, %p69
    %p71 = scmp.ne.s32.totalorder %s59, %s60
    %p72 = scmp.eq.s32.totalorder %s15, 5
    %p73 = por %p71, %p72
    %p75 = scmp.ne.s32.totalorder %s60, %s74
    %p76 = scmp.eq.s32.totalorder %s15, 0
    %p77 = por %p75, %p76
    %s79 = sadd.s32 %s78, 1
    %p82 = scmp.eq.s32.totalorder %s9, 5
    %p83 = scmp.ne.s32.totalorder %s78, %s80
    %p84 = scmp.eq.s32.totalorder %s9, 0
    %p85 = por %p83, %p84
    %p86 = scmp.ne.s32.totalorder %s78, %s80
    %p87 = scmp.eq.s32.totalorder %s14, 5
    %p88 = por %p86, %p87
    %p89 = scmp.ne.s32.totalorder %s80, %s81
    %p90 = scmp.eq.s32.totalorder %s14, 0
    %p91 = por %p89, %p90
    %p92 = scmp.ne.s32.totalorder %s80, %s81
    %p93 = scmp.eq.s32.totalorder %s15, 5
    %p94 = por %p92, %p93
    %p96 = scmp.ne.s32.totalorder %s81, %s95
    %p97 = scmp.eq.s32.totalorder %s15, 0
    %p98 = por %p96, %p97
    %s99 = ssub.s32 %s16, %s28
    %s100 = ssub.s32 %s17, %s24
    %s101 = sor.u32 %s99, %s100
    %p102 = scmp.eq.s32.totalorder %s101, 0
    %s104 = sadd.s32 %s103, 1
    %s105 = scalar_select %p102, %s103, %s104
    %p108 = pneg %p102
    %p109 = scmp.eq.s32.totalorder %s9, 5
    %p110 = por %p108, %p109
    %p111 = scmp.ne.s32.totalorder %s103, %s106
    %p112 = scmp.eq.s32.totalorder %s9, 0
    %p113 = por %p111, %p112
    %p114 = scmp.ne.s32.totalorder %s103, %s106
    %p115 = scmp.eq.s32.totalorder %s14, 5
    %p116 = por %p114, %p115
    %p117 = scmp.ne.s32.totalorder %s106, %s107
    %p118 = scmp.eq.s32.totalorder %s14, 0
    %p119 = por %p117, %p118
    %p120 = scmp.ne.s32.totalorder %s106, %s107
    %p121 = scmp.eq.s32.totalorder %s15, 5
    %p122 = por %p120, %p121
    %p124 = scmp.ne.s32.totalorder %s107, %s123
    %p125 = scmp.eq.s32.totalorder %s15, 0
    %p126 = por %p124, %p125
    %p127 = scmp.le.s32.totalorder 1, %s9
    %p128 = scmp.lt.s32.totalorder %s9, 7
    %p129 = pnand %p127, %p128
    %p130 = pneg %p129
    // Predicated region
    $region9: #{cbl_forward.1} parent=5 // pred_check
      _
    $region10: #{cbl_forward.1} parent=5 // pred_check_branch
      %132 = sbr.rel (%p129) target = $region12
    $region11: #{cbl_forward.1} parent=5 // pred_region
      %s133 = ssub.s32 %s9, 1
      // Predicated region
      $region13: #{cbl_forward.1} parent=11 // pred_check
        %p134 = pneg %p70
      $region14: #{cbl_forward.1} parent=11 // pred_check_branch
        %136 = sbr.rel (%p134) target = $region16
      $region15: #{cbl_forward.1} parent=11 // pred_region
        _
      $region16: #{cbl_forward.1} parent=11 // pred_fallthru
        _
      // Predicated region
      $region17: #{cbl_forward.1} parent=11 // pred_check
        %p137 = pneg %p91
      $region18: #{cbl_forward.1} parent=11 // pred_check_branch
        %139 = sbr.rel (%p137) target = $region20
      $region19: #{cbl_forward.1} parent=11 // pred_region
        _
      $region20: #{cbl_forward.1} parent=11 // pred_fallthru
        _
    $region12: #{cbl_forward.1} parent=5 // pred_fallthru
      _
    %p140 = scmp.lt.s32.totalorder %s9, 6
    // Predicated region
    $region21: #{cbl_forward.1} parent=5 // pred_check
      %p141 = pneg %p140
    $region22: #{cbl_forward.1} parent=5 // pred_check_branch
      %143 = sbr.rel (%p141) target = $region24
    $region23: #{cbl_forward.1} parent=5 // pred_region
      // Predicated region
      $region25: #{cbl_forward.1} parent=23 // pred_check
        %p144 = pneg %p43
      $region26: #{cbl_forward.1} parent=23 // pred_check_branch
        %146 = sbr.rel (%p144) target = $region28
      $region27: #{cbl_forward.1} parent=23 // pred_region
        %p147 = scmp.lt.s32.totalorder %s16, 1
        %s148 = scalar_select %p147, %s16, 1
        %p149 = scmp.lt.s32.totalorder %s17, 2
        %s150 = scalar_select %p149, %s17, 2
        %s151 = smul.addr %s150, 24
        %s152 = smul.addr %s148, 72
        %s153 = sadd.s32 %s151, %s152
        %s154 = smul.addr %s153, 8
        %s155 = scalar_lea.vmem %s0, %s154
      $region28: #{cbl_forward.1} parent=23 // pred_fallthru
        _
    $region24: #{cbl_forward.1} parent=5 // pred_fallthru
      _
    %p156 = scmp.le.s32.totalorder 1, %s9
    %p157 = scmp.lt.s32.totalorder %s9, 7
    %p158 = pnand %p156, %p157
    %p159 = pneg %p158
    // Predicated region
    $region29: #{cbl_forward.1} parent=5 // pred_check
      _
    $region30: #{cbl_forward.1} parent=5 // pred_check_branch
      %161 = sbr.rel (%p158) target = $region32
    $region31: #{cbl_forward.1} parent=5 // pred_region
      %s162 = ssub.s32 %s9, 1
      %p163 = scmp.lt.s32.totalorder %s18, 1
      %s164 = scalar_select %p163, %s18, 1
      %p165 = scmp.lt.s32.totalorder %s19, 2
      %s166 = scalar_select %p165, %s19, 2
      %s167 = smul.addr %s166, 24
      %s168 = smul.addr %s164, 72
      %s169 = sadd.s32 %s167, %s168
      %s170 = smul.addr %s169, 8
      %s171 = scalar_lea.vmem %s0, %s170
      %p172 = pneg %p49
      %p173 = pneg %p46
      %p174 = pneg %p70
      %p175 = pneg %p67
      %p176 = pneg %p91
      %p177 = pneg %p88
      %p178 = pneg %p119
      %p179 = pneg %p116
      %s180 = smul.u32 6, %s19
      %p181 = scmp.lt.s32.totalorder %s18, 1
      %s182 = scalar_select %p181, %s18, 1
      %p183 = scmp.lt.s32.totalorder %s180, 17
      %s184 = scalar_select %p183, %s180, 17
      %s185 = smul.addr %s184, 2
      %s186 = smul.addr %s182, 36
      %s187 = sadd.s32 %s185, %s186
      %s188 = smul.addr %s187, 8
      %s189 = scalar_lea.vmem %s3, %s188
      %p190 = scmp.lt.s32.totalorder %s18, 1
      %s191 = scalar_select %p190, %s18, 1
      %p192 = scmp.lt.s32.totalorder %s19, 2
      %s193 = scalar_select %p192, %s19, 2
      %s194 = smul.addr %s193, 24
      %s195 = smul.addr %s191, 72
      %s196 = sadd.s32 %s194, %s195
      %s197 = smul.addr %s196, 8
      %s198 = scalar_lea.vmem %s0, %s197
      %s199 = smul.u32 6, %s19
      %p200 = scmp.lt.s32.totalorder %s18, 1
      %s201 = scalar_select %p200, %s18, 1
      %p202 = scmp.lt.s32.totalorder %s199, 17
      %s203 = scalar_select %p202, %s199, 17
      %s204 = smul.addr %s203, 2
      %s205 = smul.addr %s201, 36
      %s206 = sadd.s32 %s204, %s205
      %s207 = smul.addr %s206, 8
      %s208 = scalar_lea.vmem %s3, %s207
      %s209 = smul.u32 6, %s19
      %v210 = vld [vmem:[%s198] sm:$0xff]
      %v211 = vld [vmem:[%s198 + $0x8] sm:$0xff]
      %v212 = vld [vmem:[%s198 + $0x10] sm:$0x3]
      %v213 = vld [vmem:[%s198 + $0x18] sm:$0xff]
      %v214 = vld [vmem:[%s198 + $0x20] sm:$0xff]
      %v215 = vld [vmem:[%s198 + $0x28] sm:$0x3]
      %v216 = vld [vmem:[%s198 + $0x30] sm:$0xff]
      %v217 = vld [vmem:[%s198 + $0x38] sm:$0xff]
      %v218 = vld [vmem:[%s198 + $0x40] sm:$0x3]
      %v219 = vld [vmem:[%s198 + $0x48] sm:$0xff]
      %v220 = vld [vmem:[%s198 + $0x50] sm:$0xff]
      %v221 = vld [vmem:[%s198 + $0x58] sm:$0x3]
      %v222 = vld [vmem:[%s198 + $0x60] sm:$0xff]
      %v223 = vld [vmem:[%s198 + $0x68] sm:$0xff]
      %v224 = vld [vmem:[%s198 + $0x70] sm:$0x3]
      %v225 = vld [vmem:[%s198 + $0x78] sm:$0xff]
      %v226 = vld [vmem:[%s198 + $0x80] sm:$0xff]
      %v227 = vld [vmem:[%s198 + $0x88] sm:$0x3]
      %v228 = vld [vmem:[%s198 + $0x90] sm:$0xff]
      %v229 = vld [vmem:[%s198 + $0x98] sm:$0xff]
      %v230 = vld [vmem:[%s198 + $0xa0] sm:$0x3]
      %v231 = vld [vmem:[%s198 + $0xa8] sm:$0xff]
      %v232 = vld [vmem:[%s198 + $0xb0] sm:$0xff]
      %v233 = vld [vmem:[%s198 + $0xb8] sm:$0x3]
      %v234 = vld [vmem:[%s1] sm:$0xf]
      %vm253 = vcmask 1046528
      %v254 = vrot.slane %v210, 1
      %v255 = vrot.slane %v211, 1
      %v256 = vsel %vm253, %v254, %v255
      %v257 = vrot.slane %v212, 1
      %v258 = vsel %vm253, %v255, %v257
      %v259 = vrot.slane %v213, 1
      %v260 = vrot.slane %v214, 1
      %v261 = vsel %vm253, %v259, %v260
      %v262 = vrot.slane %v215, 1
      %v263 = vsel %vm253, %v260, %v262
      %v264 = vrot.slane %v216, 1
      %v265 = vrot.slane %v217, 1
      %v266 = vsel %vm253, %v264, %v265
      %v267 = vrot.slane %v218, 1
      %v268 = vsel %vm253, %v265, %v267
      %v269 = vrot.slane %v219, 1
      %v270 = vrot.slane %v220, 1
      %v271 = vsel %vm253, %v269, %v270
      %v272 = vrot.slane %v221, 1
      %v273 = vsel %vm253, %v270, %v272
      %v274 = vrot.slane %v222, 1
      %v275 = vrot.slane %v223, 1
      %v276 = vsel %vm253, %v274, %v275
      %v277 = vrot.slane %v224, 1
      %v278 = vsel %vm253, %v275, %v277
      %v279 = vrot.slane %v225, 1
      %v280 = vrot.slane %v226, 1
      %v281 = vsel %vm253, %v279, %v280
      %v282 = vrot.slane %v227, 1
      %v283 = vsel %vm253, %v280, %v282
      %s284 = scalar_lea.vmem %s1, 4
      %v285 = vld [vmem:[%s284] sm:$0xf]
      %vm286 = vcmask 31744
      %v287 = vsel %vm286, %v256, 0
      %v289 = vsel %vm286, %v258, 0
      %v291 = vsel %vm286, %v261, 0
      %v293 = vsel %vm286, %v263, 0
      %v295 = vsel %vm286, %v266, 0
      %v297 = vsel %vm286, %v268, 0
      %v299 = vsel %vm286, %v271, 0
      %v301 = vsel %vm286, %v273, 0
      %v303 = vsel %vm286, %v276, 0
      %v305 = vsel %vm286, %v278, 0
      %v307 = vsel %vm286, %v281, 0
      %v309 = vsel %vm286, %v283, 0
      %vm311 = vcmask 1043456
      %v313 = vsel %vm311, %v285, 0
      %315 = vmatprep.subr.mxu0 0.0
      %316 = vmatpush1.msra.mxu0 %v313
      %317 = vmatprep.subr.mxu0 0.0
      %318 = vmatpush1.msra.mxu0 0.0
      %319 = vmatprep.subr.mxu0 0.0
      %320 = vmatpush1.msra.mxu0 0.0
      %321 = vmatprep.subr.mxu0 0.0
      %322 = vmatpush1.msra.mxu0 0.0
      %323 = vmatprep.subr.mxu0 0.0
      %324 = vmatpush1.msra.mxu0 0.0
      %325 = vmatprep.subr.mxu0 0.0
      %326 = vmatpush1.msra.mxu0 0.0
      %327 = vmatprep.subr.mxu0 0.0
      %328 = vmatpush1.msra.mxu0 0.0
      %329 = vmatprep.subr.mxu0 0.0
      %330 = vmatpush1.msra.mxu0 0.0
      %331 = vmatprep.subr.mxu0 0.0
      %332 = vmatpush1.msra.mxu0 0.0
      %333 = vmatprep.subr.mxu0 0.0
      %334 = vmatpush1.msra.mxu0 0.0
      %335 = vmatprep.subr.mxu0 0.0
      %336 = vmatpush1.msra.mxu0 0.0
      %337 = vmatprep.subr.mxu0 0.0
      %338 = vmatpush1.msra.mxu0 0.0
      %339 = vmatprep.subr.mxu0 0.0
      %340 = vmatpush1.msra.mxu0 0.0
      %341 = vmatprep.subr.mxu0 0.0
      %342 = vmatpush1.msra.mxu0 0.0
      %343 = vmatprep.subr.mxu0 0.0
      %344 = vmatpush1.msra.mxu0 0.0
      %345 = vmatprep.subr.mxu0 0.0
      %346 = vmatpush1.msra.mxu0 0.0
      %347 = vmatprep.subr.mxu0 0.0
      %348 = vmatpush1.msra.mxu0 0.0
      %349 = vmatprep.subr.mxu0 0.0
      %350 = vmatpush1.msra.mxu0 0.0
      %351 = vmatprep.subr.mxu0 0.0
      %352 = vmatpush1.msra.mxu0 0.0
      %353 = vmatprep.subr.mxu0 0.0
      %354 = vmatpush1.msra.mxu0 0.0
      %355 = vmatprep.subr.mxu0 0.0
      %356 = vmatpush1.msra.mxu0 0.0
      %357 = vmatprep.subr.mxu0 0.0
      %358 = vmatpush1.msra.mxu0 0.0
      %359 = vmatprep.subr.mxu0 0.0
      %360 = vmatpush1.msra.mxu0 0.0
      %361 = vmatprep.subr.mxu0 0.0
      %362 = vmatpush1.msra.mxu0 0.0
      %363 = vmatprep.subr.mxu0 0.0
      %364 = vmatpush1.msra.mxu0 0.0
      %365 = vmatprep.subr.mxu0 0.0
      %366 = vmatpush1.msra.mxu0 0.0
      %367 = vmatprep.subr.mxu0 0.0
      %368 = vmatpush1.msra.mxu0 0.0
      %369 = vmatprep.subr.mxu0 0.0
      %370 = vmatpush1.msra.mxu0 0.0
      %371 = vmatprep.subr.mxu0 0.0
      %372 = vmatpush1.msra.mxu0 0.0
      %373 = vmatprep.subr.mxu0 0.0
      %374 = vmatpush1.msra.mxu0 0.0
      %375 = vmatprep.subr.mxu0 0.0
      %376 = vmatpush1.msra.mxu0 0.0
      %377 = vmatprep.subr.mxu0 0.0
      %378 = vmatpush1.msra.mxu0 0.0
      %379 = vmatprep.mubr.f32.mxu0 0.0
      %380 = vmatmul.mubr.f32.gmra.mrb[0].mxu0 %v287
      %v381 = vpop.f32.mrb[0].mxu0
      %v382 = vadd.f32 0.0, %v381
      %v383 = vpop.f32.mrb[0].mxu0
      %384 = vmatprep.mubr.f32.mxu0 0.0
      %385 = vmatmul.mubr.f32.gmra.mrb[0].mxu0 %v289
      %v386 = vpop.f32.mrb[0].mxu0
      %v387 = vadd.f32 0.0, %v386
      %v388 = vpop.f32.mrb[0].mxu0
      %389 = vmatprep.mubr.f32.mxu0 0.0
      %390 = vmatmul.mubr.f32.gmra.mrb[0].mxu0 %v291
      %v391 = vpop.f32.mrb[0].mxu0
      %v392 = vadd.f32 0.0, %v391
      %v393 = vpop.f32.mrb[0].mxu0
      %394 = vmatprep.mubr.f32.mxu0 0.0
      %395 = vmatmul.mubr.f32.gmra.mrb[0].mxu0 %v293
      %v396 = vpop.f32.mrb[0].mxu0
      %v397 = vadd.f32 0.0, %v396
      %v398 = vpop.f32.mrb[0].mxu0
      %399 = vmatprep.mubr.f32.mxu0 0.0
      %400 = vmatmul.mubr.f32.gmra.mrb[0].mxu0 %v295
      %v401 = vpop.f32.mrb[0].mxu0
      %v402 = vadd.f32 0.0, %v401
      %v403 = vpop.f32.mrb[0].mxu0
      %404 = vmatprep.mubr.f32.mxu0 0.0
      %405 = vmatmul.mubr.f32.gmra.mrb[0].mxu0 %v297
      %v406 = vpop.f32.mrb[0].mxu0
      %v407 = vadd.f32 0.0, %v406
      %v408 = vpop.f32.mrb[0].mxu0
      %409 = vmatprep.mubr.f32.mxu0 0.0
      %410 = vmatmul.mubr.f32.gmra.mrb[0].mxu0 %v299
      %v411 = vpop.f32.mrb[0].mxu0
      %v412 = vadd.f32 0.0, %v411
      %v413 = vpop.f32.mrb[0].mxu0
      %414 = vmatprep.mubr.f32.mxu0 0.0
      %415 = vmatmul.mubr.f32.gmra.mrb[0].mxu0 %v301
      %v416 = vpop.f32.mrb[0].mxu0
      %v417 = vadd.f32 0.0, %v416
      %v418 = vpop.f32.mrb[0].mxu0
      %419 = vmatprep.mubr.f32.mxu0 0.0
      %420 = vmatmul.mubr.f32.gmra.mrb[0].mxu0 %v303
      %v421 = vpop.f32.mrb[0].mxu0
      %v422 = vadd.f32 0.0, %v421
      %v423 = vpop.f32.mrb[0].mxu0
      %424 = vmatprep.mubr.f32.mxu0 0.0
      %425 = vmatmul.mubr.f32.gmra.mrb[0].mxu0 %v305
      %v426 = vpop.f32.mrb[0].mxu0
      %v427 = vadd.f32 0.0, %v426
      %v428 = vpop.f32.mrb[0].mxu0
      %429 = vmatprep.mubr.f32.mxu0 0.0
      %430 = vmatmul.mubr.f32.gmra.mrb[0].mxu0 %v307
      %v431 = vpop.f32.mrb[0].mxu0
      %v432 = vadd.f32 0.0, %v431
      %v433 = vpop.f32.mrb[0].mxu0
      %434 = vmatprep.mubr.f32.mxu0 0.0
      %435 = vmatmul.mubr.f32.gmra.mrb[0].mxu0 %v309
      %v436 = vpop.f32.mrb[0].mxu0
      %v437 = vadd.f32 0.0, %v436
      %v438 = vpop.f32.mrb[0].mxu0
      %439 = vdwg.mxu0
      %v440 = vsel %vm286, %v210, 0
      %v442 = vsel %vm286, %v211, 0
      %v444 = vsel %vm286, %v213, 0
      %v446 = vsel %vm286, %v214, 0
      %v448 = vsel %vm286, %v216, 0
      %v450 = vsel %vm286, %v217, 0
      %v452 = vsel %vm286, %v219, 0
      %v454 = vsel %vm286, %v220, 0
      %v456 = vsel %vm286, %v222, 0
      %v458 = vsel %vm286, %v223, 0
      %v460 = vsel %vm286, %v225, 0
      %v462 = vsel %vm286, %v226, 0
      %v465 = vsel %vm311, %v234, 0
      %467 = vmatprep.subr.mxu0 0.0
      %468 = vmatpush1.msra.mxu0 %v465
      %469 = vmatprep.subr.mxu0 0.0
      %470 = vmatpush1.msra.mxu0 0.0
      %471 = vmatprep.subr.mxu0 0.0
      %472 = vmatpush1.msra.mxu0 0.0
      %473 = vmatprep.subr.mxu0 0.0
      %474 = vmatpush1.msra.mxu0 0.0
      %475 = vmatprep.subr.mxu0 0.0
      %476 = vmatpush1.msra.mxu0 0.0
      %477 = vmatprep.subr.mxu0 0.0
      %478 = vmatpush1.msra.mxu0 0.0
      %479 = vmatprep.subr.mxu0 0.0
      %480 = vmatpush1.msra.mxu0 0.0
      %481 = vmatprep.subr.mxu0 0.0
      %482 = vmatpush1.msra.mxu0 0.0
      %483 = vmatprep.subr.mxu0 0.0
      %484 = vmatpush1.msra.mxu0 0.0
      %485 = vmatprep.subr.mxu0 0.0
      %486 = vmatpush1.msra.mxu0 0.0
      %487 = vmatprep.subr.mxu0 0.0
      %488 = vmatpush1.msra.mxu0 0.0
      %489 = vmatprep.subr.mxu0 0.0
      %490 = vmatpush1.msra.mxu0 0.0
      %491 = vmatprep.subr.mxu0 0.0
      %492 = vmatpush1.msra.mxu0 0.0
      %493 = vmatprep.subr.mxu0 0.0
      %494 = vmatpush1.msra.mxu0 0.0
      %495 = vmatprep.subr.mxu0 0.0
      %496 = vmatpush1.msra.mxu0 0.0
      %497 = vmatprep.subr.mxu0 0.0
      %498 = vmatpush1.msra.mxu0 0.0
      %499 = vmatprep.subr.mxu0 0.0
      %500 = vmatpush1.msra.mxu0 0.0
      %501 = vmatprep.subr.mxu0 0.0
      %502 = vmatpush1.msra.mxu0 0.0
      %503 = vmatprep.subr.mxu0 0.0
      %504 = vmatpush1.msra.mxu0 0.0
      %505 = vmatprep.subr.mxu0 0.0
      %506 = vmatpush1.msra.mxu0 0.0
      %507 = vmatprep.subr.mxu0 0.0
      %508 = vmatpush1.msra.mxu0 0.0
      %509 = vmatprep.subr.mxu0 0.0
      %510 = vmatpush1.msra.mxu0 0.0
      %511 = vmatprep.subr.mxu0 0.0
      %512 = vmatpush1.msra.mxu0 0.0
      %513 = vmatprep.subr.mxu0 0.0
      %514 = vmatpush1.msra.mxu0 0.0
      %515 = vmatprep.subr.mxu0 0.0
      %516 = vmatpush1.msra.mxu0 0.0
      %517 = vmatprep.subr.mxu0 0.0
      %518 = vmatpush1.msra.mxu0 0.0
      %519 = vmatprep.subr.mxu0 0.0
      %520 = vmatpush1.msra.mxu0 0.0
      %521 = vmatprep.subr.mxu0 0.0
      %522 = vmatpush1.msra.mxu0 0.0
      %523 = vmatprep.subr.mxu0 0.0
      %524 = vmatpush1.msra.mxu0 0.0
      %525 = vmatprep.subr.mxu0 0.0
      %526 = vmatpush1.msra.mxu0 0.0
      %527 = vmatprep.subr.mxu0 0.0
      %528 = vmatpush1.msra.mxu0 0.0
      %529 = vmatprep.subr.mxu0 0.0
      %530 = vmatpush1.msra.mxu0 0.0
      %531 = vmatprep.mubr.f32.mxu0 0.0
      %532 = vmatmul.mubr.f32.gmra.mrb[0].mxu0 %v440
      %v533 = vpop.f32.mrb[0].mxu0
      %v534 = vadd.f32 %v382, %v533
      %v535 = vpop.f32.mrb[0].mxu0
      %536 = vmatprep.mubr.f32.mxu0 0.0
      %537 = vmatmul.mubr.f32.gmra.mrb[0].mxu0 %v442
      %v538 = vpop.f32.mrb[0].mxu0
      %v539 = vadd.f32 %v387, %v538
      %v540 = vpop.f32.mrb[0].mxu0
      %541 = vmatprep.mubr.f32.mxu0 0.0
      %542 = vmatmul.mubr.f32.gmra.mrb[0].mxu0 %v444
      %v543 = vpop.f32.mrb[0].mxu0
      %v544 = vadd.f32 %v392, %v543
      %v545 = vpop.f32.mrb[0].mxu0
      %546 = vmatprep.mubr.f32.mxu0 0.0
      %547 = vmatmul.mubr.f32.gmra.mrb[0].mxu0 %v446
      %v548 = vpop.f32.mrb[0].mxu0
      %v549 = vadd.f32 %v397, %v548
      %v550 = vpop.f32.mrb[0].mxu0
      %551 = vmatprep.mubr.f32.mxu0 0.0
      %552 = vmatmul.mubr.f32.gmra.mrb[0].mxu0 %v448
      %v553 = vpop.f32.mrb[0].mxu0
      %v554 = vadd.f32 %v402, %v553
      %v555 = vpop.f32.mrb[0].mxu0
      %556 = vmatprep.mubr.f32.mxu0 0.0
      %557 = vmatmul.mubr.f32.gmra.mrb[0].mxu0 %v450
      %v558 = vpop.f32.mrb[0].mxu0
      %v559 = vadd.f32 %v407, %v558
      %v560 = vpop.f32.mrb[0].mxu0
      %561 = vmatprep.mubr.f32.mxu0 0.0
      %562 = vmatmul.mubr.f32.gmra.mrb[0].mxu0 %v452
      %v563 = vpop.f32.mrb[0].mxu0
      %v564 = vadd.f32 %v412, %v563
      %v565 = vpop.f32.mrb[0].mxu0
      %566 = vmatprep.mubr.f32.mxu0 0.0
      %567 = vmatmul.mubr.f32.gmra.mrb[0].mxu0 %v454
      %v568 = vpop.f32.mrb[0].mxu0
      %v569 = vadd.f32 %v417, %v568
      %v570 = vpop.f32.mrb[0].mxu0
      %571 = vmatprep.mubr.f32.mxu0 0.0
      %572 = vmatmul.mubr.f32.gmra.mrb[0].mxu0 %v456
      %v573 = vpop.f32.mrb[0].mxu0
      %v574 = vadd.f32 %v422, %v573
      %v575 = vpop.f32.mrb[0].mxu0
      %576 = vmatprep.mubr.f32.mxu0 0.0
      %577 = vmatmul.mubr.f32.gmra.mrb[0].mxu0 %v458
      %v578 = vpop.f32.mrb[0].mxu0
      %v579 = vadd.f32 %v427, %v578
      %v580 = vpop.f32.mrb[0].mxu0
      %581 = vmatprep.mubr.f32.mxu0 0.0
      %582 = vmatmul.mubr.f32.gmra.mrb[0].mxu0 %v460
      %v583 = vpop.f32.mrb[0].mxu0
      %v584 = vadd.f32 %v432, %v583
      %v585 = vpop.f32.mrb[0].mxu0
      %586 = vmatprep.mubr.f32.mxu0 0.0
      %587 = vmatmul.mubr.f32.gmra.mrb[0].mxu0 %v462
      %v588 = vpop.f32.mrb[0].mxu0
      %v589 = vadd.f32 %v437, %v588
      %v590 = vpop.f32.mrb[0].mxu0
      %591 = vdwg.mxu0
      %vm592 = vcmask 1045504
      %v593 = vrot.slane %v210, 2
      %v594 = vrot.slane %v211, 2
      %v595 = vsel %vm592, %v593, %v594
      %v596 = vrot.slane %v212, 2
      %v597 = vsel %vm592, %v594, %v596
      %v598 = vrot.slane %v213, 2
      %v599 = vrot.slane %v214, 2
      %v600 = vsel %vm592, %v598, %v599
      %v601 = vrot.slane %v215, 2
      %v602 = vsel %vm592, %v599, %v601
      %v603 = vrot.slane %v216, 2
      %v604 = vrot.slane %v217, 2
      %v605 = vsel %vm592, %v603, %v604
      %v606 = vrot.slane %v218, 2
      %v607 = vsel %vm592, %v604, %v606
      %v608 = vrot.slane %v219, 2
      %v609 = vrot.slane %v220, 2
      %v610 = vsel %vm592, %v608, %v609
      %v611 = vrot.slane %v221, 2
      %v612 = vsel %vm592, %v609, %v611
      %v613 = vrot.slane %v222, 2
      %v614 = vrot.slane %v223, 2
      %v615 = vsel %vm592, %v613, %v614
      %v616 = vrot.slane %v224, 2
      %v617 = vsel %vm592, %v614, %v616
      %v618 = vrot.slane %v225, 2
      %v619 = vrot.slane %v226, 2
      %v620 = vsel %vm592, %v618, %v619
      %v621 = vrot.slane %v227, 2
      %v622 = vsel %vm592, %v619, %v621
      %s623 = scalar_lea.vmem %s1, 8
      %v624 = vld [vmem:[%s623] sm:$0xf]
      %v625 = vsel %vm286, %v595, 0
      %v627 = vsel %vm286, %v597, 0
      %v629 = vsel %vm286, %v600, 0
      %v631 = vsel %vm286, %v602, 0
      %v633 = vsel %vm286, %v605, 0
      %v635 = vsel %vm286, %v607, 0
      %v637 = vsel %vm286, %v610, 0
      %v639 = vsel %vm286, %v612, 0
      %v641 = vsel %vm286, %v615, 0
      %v643 = vsel %vm286, %v617, 0
      %v645 = vsel %vm286, %v620, 0
      %v647 = vsel %vm286, %v622, 0
      %v650 = vsel %vm311, %v624, 0
      %652 = vmatprep.subr.mxu0 0.0
      %653 = vmatpush1.msra.mxu0 %v650
      %654 = vmatprep.subr.mxu0 0.0
      %655 = vmatpush1.msra.mxu0 0.0
      %656 = vmatprep.subr.mxu0 0.0
      %657 = vmatpush1.msra.mxu0 0.0
      %658 = vmatprep.subr.mxu0 0.0
      %659 = vmatpush1.msra.mxu0 0.0
      %660 = vmatprep.subr.mxu0 0.0
      %661 = vmatpush1.msra.mxu0 0.0
      %662 = vmatprep.subr.mxu0 0.0
      %663 = vmatpush1.msra.mxu0 0.0
      %664 = vmatprep.subr.mxu0 0.0
      %665 = vmatpush1.msra.mxu0 0.0
      %666 = vmatprep.subr.mxu0 0.0
      %667 = vmatpush1.msra.mxu0 0.0
      %668 = vmatprep.subr.mxu0 0.0
      %669 = vmatpush1.msra.mxu0 0.0
      %670 = vmatprep.subr.mxu0 0.0
      %671 = vmatpush1.msra.mxu0 0.0
      %672 = vmatprep.subr.mxu0 0.0
      %673 = vmatpush1.msra.mxu0 0.0
      %674 = vmatprep.subr.mxu0 0.0
      %675 = vmatpush1.msra.mxu0 0.0
      %676 = vmatprep.subr.mxu0 0.0
      %677 = vmatpush1.msra.mxu0 0.0
      %678 = vmatprep.subr.mxu0 0.0
      %679 = vmatpush1.msra.mxu0 0.0
      %680 = vmatprep.subr.mxu0 0.0
      %681 = vmatpush1.msra.mxu0 0.0
      %682 = vmatprep.subr.mxu0 0.0
      %683 = vmatpush1.msra.mxu0 0.0
      %684 = vmatprep.subr.mxu0 0.0
      %685 = vmatpush1.msra.mxu0 0.0
      %686 = vmatprep.subr.mxu0 0.0
      %687 = vmatpush1.msra.mxu0 0.0
      %688 = vmatprep.subr.mxu0 0.0
      %689 = vmatpush1.msra.mxu0 0.0
      %690 = vmatprep.subr.mxu0 0.0
      %691 = vmatpush1.msra.mxu0 0.0
      %692 = vmatprep.subr.mxu0 0.0
      %693 = vmatpush1.msra.mxu0 0.0
      %694 = vmatprep.subr.mxu0 0.0
      %695 = vmatpush1.msra.mxu0 0.0
      %696 = vmatprep.subr.mxu0 0.0
      %697 = vmatpush1.msra.mxu0 0.0
      %698 = vmatprep.subr.mxu0 0.0
      %699 = vmatpush1.msra.mxu0 0.0
      %700 = vmatprep.subr.mxu0 0.0
      %701 = vmatpush1.msra.mxu0 0.0
      %702 = vmatprep.subr.mxu0 0.0
      %703 = vmatpush1.msra.mxu0 0.0
      %704 = vmatprep.subr.mxu0 0.0
      %705 = vmatpush1.msra.mxu0 0.0
      %706 = vmatprep.subr.mxu0 0.0
      %707 = vmatpush1.msra.mxu0 0.0
      %708 = vmatprep.subr.mxu0 0.0
      %709 = vmatpush1.msra.mxu0 0.0
      %710 = vmatprep.subr.mxu0 0.0
      %711 = vmatpush1.msra.mxu0 0.0
      %712 = vmatprep.subr.mxu0 0.0
      %713 = vmatpush1.msra.mxu0 0.0
      %714 = vmatprep.subr.mxu0 0.0
      %715 = vmatpush1.msra.mxu0 0.0
      %716 = vmatprep.mubr.f32.mxu0 0.0
      %717 = vmatmul.mubr.f32.gmra.mrb[0].mxu0 %v625
      %v718 = vpop.f32.mrb[0].mxu0
      %v719 = vadd.f32 0.0, %v718
      %v720 = vpop.f32.mrb[0].mxu0
      %721 = vmatprep.mubr.f32.mxu0 0.0
      %722 = vmatmul.mubr.f32.gmra.mrb[0].mxu0 %v627
      %v723 = vpop.f32.mrb[0].mxu0
      %v724 = vadd.f32 0.0, %v723
      %v725 = vpop.f32.mrb[0].mxu0
      %726 = vmatprep.mubr.f32.mxu0 0.0
      %727 = vmatmul.mubr.f32.gmra.mrb[0].mxu0 %v629
      %v728 = vpop.f32.mrb[0].mxu0
      %v729 = vadd.f32 0.0, %v728
      %v730 = vpop.f32.mrb[0].mxu0
      %731 = vmatprep.mubr.f32.mxu0 0.0
      %732 = vmatmul.mubr.f32.gmra.mrb[0].mxu0 %v631
      %v733 = vpop.f32.mrb[0].mxu0
      %v734 = vadd.f32 0.0, %v733
      %v735 = vpop.f32.mrb[0].mxu0
      %736 = vmatprep.mubr.f32.mxu0 0.0
      %737 = vmatmul.mubr.f32.gmra.mrb[0].mxu0 %v633
      %v738 = vpop.f32.mrb[0].mxu0
      %v739 = vadd.f32 0.0, %v738
      %v740 = vpop.f32.mrb[0].mxu0
      %741 = vmatprep.mubr.f32.mxu0 0.0
      %742 = vmatmul.mubr.f32.gmra.mrb[0].mxu0 %v635
      %v743 = vpop.f32.mrb[0].mxu0
      %v744 = vadd.f32 0.0, %v743
      %v745 = vpop.f32.mrb[0].mxu0
      %746 = vmatprep.mubr.f32.mxu0 0.0
      %747 = vmatmul.mubr.f32.gmra.mrb[0].mxu0 %v637
      %v748 = vpop.f32.mrb[0].mxu0
      %v749 = vadd.f32 0.0, %v748
      %v750 = vpop.f32.mrb[0].mxu0
      %751 = vmatprep.mubr.f32.mxu0 0.0
      %752 = vmatmul.mubr.f32.gmra.mrb[0].mxu0 %v639
      %v753 = vpop.f32.mrb[0].mxu0
      %v754 = vadd.f32 0.0, %v753
      %v755 = vpop.f32.mrb[0].mxu0
      %756 = vmatprep.mubr.f32.mxu0 0.0
      %757 = vmatmul.mubr.f32.gmra.mrb[0].mxu0 %v641
      %v758 = vpop.f32.mrb[0].mxu0
      %v759 = vadd.f32 0.0, %v758
      %v760 = vpop.f32.mrb[0].mxu0
      %761 = vmatprep.mubr.f32.mxu0 0.0
      %762 = vmatmul.mubr.f32.gmra.mrb[0].mxu0 %v643
      %v763 = vpop.f32.mrb[0].mxu0
      %v764 = vadd.f32 0.0, %v763
      %v765 = vpop.f32.mrb[0].mxu0
      %766 = vmatprep.mubr.f32.mxu0 0.0
      %767 = vmatmul.mubr.f32.gmra.mrb[0].mxu0 %v645
      %v768 = vpop.f32.mrb[0].mxu0
      %v769 = vadd.f32 0.0, %v768
      %v770 = vpop.f32.mrb[0].mxu0
      %771 = vmatprep.mubr.f32.mxu0 0.0
      %772 = vmatmul.mubr.f32.gmra.mrb[0].mxu0 %v647
      %v773 = vpop.f32.mrb[0].mxu0
      %v774 = vadd.f32 0.0, %v773
      %v775 = vpop.f32.mrb[0].mxu0
      %776 = vdwg.mxu0
      %v777 = vadd.f32 %v534, %v719
      %v778 = vadd.f32 %v539, %v724
      %v779 = vadd.f32 %v544, %v729
      %v780 = vadd.f32 %v549, %v734
      %v781 = vadd.f32 %v554, %v739
      %v782 = vadd.f32 %v559, %v744
      %v783 = vadd.f32 %v564, %v749
      %v784 = vadd.f32 %v569, %v754
      %v785 = vadd.f32 %v574, %v759
      %v786 = vadd.f32 %v579, %v764
      %v787 = vadd.f32 %v584, %v769
      %v788 = vadd.f32 %v589, %v774
      %s789 = scalar_lea.vmem %s1, 12
      %v790 = vld [vmem:[%s789] sm:$0xf]
      %v792 = vsel %vm286, %v228, 0
      %v795 = vsel %vm286, %v229, 0
      %v798 = vsel %vm311, %v790, 0
      %800 = vmatprep.subr.mxu0 0.0
      %801 = vmatpush1.msra.mxu0 %v798
      %802 = vmatprep.subr.mxu0 0.0
      %803 = vmatpush1.msra.mxu0 0.0
      %804 = vmatprep.subr.mxu0 0.0
      %805 = vmatpush1.msra.mxu0 0.0
      %806 = vmatprep.subr.mxu0 0.0
      %807 = vmatpush1.msra.mxu0 0.0
      %808 = vmatprep.subr.mxu0 0.0
      %809 = vmatpush1.msra.mxu0 0.0
      %810 = vmatprep.subr.mxu0 0.0
      %811 = vmatpush1.msra.mxu0 0.0
      %812 = vmatprep.subr.mxu0 0.0
      %813 = vmatpush1.msra.mxu0 0.0
      %814 = vmatprep.subr.mxu0 0.0
      %815 = vmatpush1.msra.mxu0 0.0
      %816 = vmatprep.subr.mxu0 0.0
      %817 = vmatpush1.msra.mxu0 0.0
      %818 = vmatprep.subr.mxu0 0.0
      %819 = vmatpush1.msra.mxu0 0.0
      %820 = vmatprep.subr.mxu0 0.0
      %821 = vmatpush1.msra.mxu0 0.0
      %822 = vmatprep.subr.mxu0 0.0
      %823 = vmatpush1.msra.mxu0 0.0
      %824 = vmatprep.subr.mxu0 0.0
      %825 = vmatpush1.msra.mxu0 0.0
      %826 = vmatprep.subr.mxu0 0.0
      %827 = vmatpush1.msra.mxu0 0.0
      %828 = vmatprep.subr.mxu0 0.0
      %829 = vmatpush1.msra.mxu0 0.0
      %830 = vmatprep.subr.mxu0 0.0
      %831 = vmatpush1.msra.mxu0 0.0
      %832 = vmatprep.subr.mxu0 0.0
      %833 = vmatpush1.msra.mxu0 0.0
      %834 = vmatprep.subr.mxu0 0.0
      %835 = vmatpush1.msra.mxu0 0.0
      %836 = vmatprep.subr.mxu0 0.0
      %837 = vmatpush1.msra.mxu0 0.0
      %838 = vmatprep.subr.mxu0 0.0
      %839 = vmatpush1.msra.mxu0 0.0
      %840 = vmatprep.subr.mxu0 0.0
      %841 = vmatpush1.msra.mxu0 0.0
      %842 = vmatprep.subr.mxu0 0.0
      %843 = vmatpush1.msra.mxu0 0.0
      %844 = vmatprep.subr.mxu0 0.0
      %845 = vmatpush1.msra.mxu0 0.0
      %846 = vmatprep.subr.mxu0 0.0
      %847 = vmatpush1.msra.mxu0 0.0
      %848 = vmatprep.subr.mxu0 0.0
      %849 = vmatpush1.msra.mxu0 0.0
      %850 = vmatprep.subr.mxu0 0.0
      %851 = vmatpush1.msra.mxu0 0.0
      %852 = vmatprep.subr.mxu0 0.0
      %853 = vmatpush1.msra.mxu0 0.0
      %854 = vmatprep.subr.mxu0 0.0
      %855 = vmatpush1.msra.mxu0 0.0
      %856 = vmatprep.subr.mxu0 0.0
      %857 = vmatpush1.msra.mxu0 0.0
      %858 = vmatprep.subr.mxu0 0.0
      %859 = vmatpush1.msra.mxu0 0.0
      %860 = vmatprep.subr.mxu0 0.0
      %861 = vmatpush1.msra.mxu0 0.0
      %862 = vmatprep.subr.mxu0 0.0
      %863 = vmatpush1.msra.mxu0 0.0
      %864 = vmatprep.mubr.f32.mxu0 0.0
      %865 = vmatmul.mubr.f32.gmra.mrb[0].mxu0 %v444
      %v866 = vpop.f32.mrb[0].mxu0
      %v867 = vadd.f32 0.0, %v866
      %v868 = vpop.f32.mrb[0].mxu0
      %869 = vmatprep.mubr.f32.mxu0 0.0
      %870 = vmatmul.mubr.f32.gmra.mrb[0].mxu0 %v446
      %v871 = vpop.f32.mrb[0].mxu0
      %v872 = vadd.f32 0.0, %v871
      %v873 = vpop.f32.mrb[0].mxu0
      %874 = vmatprep.mubr.f32.mxu0 0.0
      %875 = vmatmul.mubr.f32.gmra.mrb[0].mxu0 %v448
      %v876 = vpop.f32.mrb[0].mxu0
      %v877 = vadd.f32 0.0, %v876
      %v878 = vpop.f32.mrb[0].mxu0
      %879 = vmatprep.mubr.f32.mxu0 0.0
      %880 = vmatmul.mubr.f32.gmra.mrb[0].mxu0 %v450
      %v881 = vpop.f32.mrb[0].mxu0
      %v882 = vadd.f32 0.0, %v881
      %v883 = vpop.f32.mrb[0].mxu0
      %884 = vmatprep.mubr.f32.mxu0 0.0
      %885 = vmatmul.mubr.f32.gmra.mrb[0].mxu0 %v452
      %v886 = vpop.f32.mrb[0].mxu0
      %v887 = vadd.f32 0.0, %v886
      %v888 = vpop.f32.mrb[0].mxu0
      %889 = vmatprep.mubr.f32.mxu0 0.0
      %890 = vmatmul.mubr.f32.gmra.mrb[0].mxu0 %v454
      %v891 = vpop.f32.mrb[0].mxu0
      %v892 = vadd.f32 0.0, %v891
      %v893 = vpop.f32.mrb[0].mxu0
      %894 = vmatprep.mubr.f32.mxu0 0.0
      %895 = vmatmul.mubr.f32.gmra.mrb[0].mxu0 %v456
      %v896 = vpop.f32.mrb[0].mxu0
      %v897 = vadd.f32 0.0, %v896
      %v898 = vpop.f32.mrb[0].mxu0
      %899 = vmatprep.mubr.f32.mxu0 0.0
      %900 = vmatmul.mubr.f32.gmra.mrb[0].mxu0 %v458
      %v901 = vpop.f32.mrb[0].mxu0
      %v902 = vadd.f32 0.0, %v901
      %v903 = vpop.f32.mrb[0].mxu0
      %904 = vmatprep.mubr.f32.mxu0 0.0
      %905 = vmatmul.mubr.f32.gmra.mrb[0].mxu0 %v460
      %v906 = vpop.f32.mrb[0].mxu0
      %v907 = vadd.f32 0.0, %v906
      %v908 = vpop.f32.mrb[0].mxu0
      %909 = vmatprep.mubr.f32.mxu0 0.0
      %910 = vmatmul.mubr.f32.gmra.mrb[0].mxu0 %v462
      %v911 = vpop.f32.mrb[0].mxu0
      %v912 = vadd.f32 0.0, %v911
      %v913 = vpop.f32.mrb[0].mxu0
      %914 = vmatprep.mubr.f32.mxu0 0.0
      %915 = vmatmul.mubr.f32.gmra.mrb[0].mxu0 %v792
      %v916 = vpop.f32.mrb[0].mxu0
      %v917 = vadd.f32 0.0, %v916
      %v918 = vpop.f32.mrb[0].mxu0
      %919 = vmatprep.mubr.f32.mxu0 0.0
      %920 = vmatmul.mubr.f32.gmra.mrb[0].mxu0 %v795
      %v921 = vpop.f32.mrb[0].mxu0
      %v922 = vadd.f32 0.0, %v921
      %v923 = vpop.f32.mrb[0].mxu0
      %924 = vdwg.mxu0
      %v925 = vadd.f32 %v777, %v867
      %v926 = vadd.f32 %v778, %v872
      %v927 = vadd.f32 %v779, %v877
      %v928 = vadd.f32 %v780, %v882
      %v929 = vadd.f32 %v781, %v887
      %v930 = vadd.f32 %v782, %v892
      %v931 = vadd.f32 %v783, %v897
      %v932 = vadd.f32 %v784, %v902
      %v933 = vadd.f32 %v785, %v907
      %v934 = vadd.f32 %v786, %v912
      %v935 = vadd.f32 %v787, %v917
      %v936 = vadd.f32 %v788, %v922
      %v938 = vrot.slane %v228, 1
      %v939 = vrot.slane %v229, 1
      %v940 = vsel %vm253, %v938, %v939
      %v941 = vrot.slane %v230, 1
      %v942 = vsel %vm253, %v939, %v941
      %s943 = scalar_lea.vmem %s1, 16
      %v944 = vld [vmem:[%s943] sm:$0xf]
      %v945 = vsel %vm286, %v940, 0
      %v947 = vsel %vm286, %v942, 0
      %v950 = vsel %vm311, %v944, 0
      %952 = vmatprep.subr.mxu0 0.0
      %953 = vmatpush1.msra.mxu0 %v950
      %954 = vmatprep.subr.mxu0 0.0
      %955 = vmatpush1.msra.mxu0 0.0
      %956 = vmatprep.subr.mxu0 0.0
      %957 = vmatpush1.msra.mxu0 0.0
      %958 = vmatprep.subr.mxu0 0.0
      %959 = vmatpush1.msra.mxu0 0.0
      %960 = vmatprep.subr.mxu0 0.0
      %961 = vmatpush1.msra.mxu0 0.0
      %962 = vmatprep.subr.mxu0 0.0
      %963 = vmatpush1.msra.mxu0 0.0
      %964 = vmatprep.subr.mxu0 0.0
      %965 = vmatpush1.msra.mxu0 0.0
      %966 = vmatprep.subr.mxu0 0.0
      %967 = vmatpush1.msra.mxu0 0.0
      %968 = vmatprep.subr.mxu0 0.0
      %969 = vmatpush1.msra.mxu0 0.0
      %970 = vmatprep.subr.mxu0 0.0
      %971 = vmatpush1.msra.mxu0 0.0
      %972 = vmatprep.subr.mxu0 0.0
      %973 = vmatpush1.msra.mxu0 0.0
      %974 = vmatprep.subr.mxu0 0.0
      %975 = vmatpush1.msra.mxu0 0.0
      %976 = vmatprep.subr.mxu0 0.0
      %977 = vmatpush1.msra.mxu0 0.0
      %978 = vmatprep.subr.mxu0 0.0
      %979 = vmatpush1.msra.mxu0 0.0
      %980 = vmatprep.subr.mxu0 0.0
      %981 = vmatpush1.msra.mxu0 0.0
      %982 = vmatprep.subr.mxu0 0.0
      %983 = vmatpush1.msra.mxu0 0.0
      %984 = vmatprep.subr.mxu0 0.0
      %985 = vmatpush1.msra.mxu0 0.0
      %986 = vmatprep.subr.mxu0 0.0
      %987 = vmatpush1.msra.mxu0 0.0
      %988 = vmatprep.subr.mxu0 0.0
      %989 = vmatpush1.msra.mxu0 0.0
      %990 = vmatprep.subr.mxu0 0.0
      %991 = vmatpush1.msra.mxu0 0.0
      %992 = vmatprep.subr.mxu0 0.0
      %993 = vmatpush1.msra.mxu0 0.0
      %994 = vmatprep.subr.mxu0 0.0
      %995 = vmatpush1.msra.mxu0 0.0
      %996 = vmatprep.subr.mxu0 0.0
      %997 = vmatpush1.msra.mxu0 0.0
      %998 = vmatprep.subr.mxu0 0.0
      %999 = vmatpush1.msra.mxu0 0.0
      %1000 = vmatprep.subr.mxu0 0.0
      %1001 = vmatpush1.msra.mxu0 0.0
      %1002 = vmatprep.subr.mxu0 0.0
      %1003 = vmatpush1.msra.mxu0 0.0
      %1004 = vmatprep.subr.mxu0 0.0
      %1005 = vmatpush1.msra.mxu0 0.0
      %1006 = vmatprep.subr.mxu0 0.0
      %1007 = vmatpush1.msra.mxu0 0.0
      %1008 = vmatprep.subr.mxu0 0.0
      %1009 = vmatpush1.msra.mxu0 0.0
      %1010 = vmatprep.subr.mxu0 0.0
      %1011 = vmatpush1.msra.mxu0 0.0
      %1012 = vmatprep.subr.mxu0 0.0
      %1013 = vmatpush1.msra.mxu0 0.0
      %1014 = vmatprep.subr.mxu0 0.0
      %1015 = vmatpush1.msra.mxu0 0.0
      %1016 = vmatprep.mubr.f32.mxu0 0.0
      %1017 = vmatmul.mubr.f32.gmra.mrb[0].mxu0 %v291
      %v1018 = vpop.f32.mrb[0].mxu0
      %v1019 = vadd.f32 0.0, %v1018
      %v1020 = vpop.f32.mrb[0].mxu0
      %1021 = vmatprep.mubr.f32.mxu0 0.0
      %1022 = vmatmul.mubr.f32.gmra.mrb[0].mxu0 %v293
      %v1023 = vpop.f32.mrb[0].mxu0
      %v1024 = vadd.f32 0.0, %v1023
      %v1025 = vpop.f32.mrb[0].mxu0
      %1026 = vmatprep.mubr.f32.mxu0 0.0
      %1027 = vmatmul.mubr.f32.gmra.mrb[0].mxu0 %v295
      %v1028 = vpop.f32.mrb[0].mxu0
      %v1029 = vadd.f32 0.0, %v1028
      %v1030 = vpop.f32.mrb[0].mxu0
      %1031 = vmatprep.mubr.f32.mxu0 0.0
      %1032 = vmatmul.mubr.f32.gmra.mrb[0].mxu0 %v297
      %v1033 = vpop.f32.mrb[0].mxu0
      %v1034 = vadd.f32 0.0, %v1033
      %v1035 = vpop.f32.mrb[0].mxu0
      %1036 = vmatprep.mubr.f32.mxu0 0.0
      %1037 = vmatmul.mubr.f32.gmra.mrb[0].mxu0 %v299
      %v1038 = vpop.f32.mrb[0].mxu0
      %v1039 = vadd.f32 0.0, %v1038
      %v1040 = vpop.f32.mrb[0].mxu0
      %1041 = vmatprep.mubr.f32.mxu0 0.0
      %1042 = vmatmul.mubr.f32.gmra.mrb[0].mxu0 %v301
      %v1043 = vpop.f32.mrb[0].mxu0
      %v1044 = vadd.f32 0.0, %v1043
      %v1045 = vpop.f32.mrb[0].mxu0
      %1046 = vmatprep.mubr.f32.mxu0 0.0
      %1047 = vmatmul.mubr.f32.gmra.mrb[0].mxu0 %v303
      %v1048 = vpop.f32.mrb[0].mxu0
      %v1049 = vadd.f32 0.0, %v1048
      %v1050 = vpop.f32.mrb[0].mxu0
      %1051 = vmatprep.mubr.f32.mxu0 0.0
      %1052 = vmatmul.mubr.f32.gmra.mrb[0].mxu0 %v305
      %v1053 = vpop.f32.mrb[0].mxu0
      %v1054 = vadd.f32 0.0, %v1053
      %v1055 = vpop.f32.mrb[0].mxu0
      %1056 = vmatprep.mubr.f32.mxu0 0.0
      %1057 = vmatmul.mubr.f32.gmra.mrb[0].mxu0 %v307
      %v1058 = vpop.f32.mrb[0].mxu0
      %v1059 = vadd.f32 0.0, %v1058
      %v1060 = vpop.f32.mrb[0].mxu0
      %1061 = vmatprep.mubr.f32.mxu0 0.0
      %1062 = vmatmul.mubr.f32.gmra.mrb[0].mxu0 %v309
      %v1063 = vpop.f32.mrb[0].mxu0
      %v1064 = vadd.f32 0.0, %v1063
      %v1065 = vpop.f32.mrb[0].mxu0
      %1066 = vmatprep.mubr.f32.mxu0 0.0
      %1067 = vmatmul.mubr.f32.gmra.mrb[0].mxu0 %v945
      %v1068 = vpop.f32.mrb[0].mxu0
      %v1069 = vadd.f32 0.0, %v1068
      %v1070 = vpop.f32.mrb[0].mxu0
      %1071 = vmatprep.mubr.f32.mxu0 0.0
      %1072 = vmatmul.mubr.f32.gmra.mrb[0].mxu0 %v947
      %v1073 = vpop.f32.mrb[0].mxu0
      %v1074 = vadd.f32 0.0, %v1073
      %v1075 = vpop.f32.mrb[0].mxu0
      %1076 = vdwg.mxu0
      %v1077 = vadd.f32 %v925, %v1019
      %v1078 = vadd.f32 %v926, %v1024
      %v1079 = vadd.f32 %v927, %v1029
      %v1080 = vadd.f32 %v928, %v1034
      %v1081 = vadd.f32 %v929, %v1039
      %v1082 = vadd.f32 %v930, %v1044
      %v1083 = vadd.f32 %v931, %v1049
      %v1084 = vadd.f32 %v932, %v1054
      %v1085 = vadd.f32 %v933, %v1059
      %v1086 = vadd.f32 %v934, %v1064
      %v1087 = vadd.f32 %v935, %v1069
      %v1088 = vadd.f32 %v936, %v1074
      %v1089 = vrot.slane %v228, 2
      %v1090 = vrot.slane %v229, 2
      %v1091 = vsel %vm592, %v1089, %v1090
      %v1092 = vrot.slane %v230, 2
      %v1093 = vsel %vm592, %v1090, %v1092
      %s1094 = scalar_lea.vmem %s1, 20
      %v1095 = vld [vmem:[%s1094] sm:$0xf]
      %v1096 = vsel %vm286, %v1091, 0
      %v1098 = vsel %vm286, %v1093, 0
      %v1101 = vsel %vm311, %v1095, 0
      %1103 = vmatprep.subr.mxu0 0.0
      %1104 = vmatpush1.msra.mxu0 %v1101
      %1105 = vmatprep.subr.mxu0 0.0
      %1106 = vmatpush1.msra.mxu0 0.0
      %1107 = vmatprep.subr.mxu0 0.0
      %1108 = vmatpush1.msra.mxu0 0.0
      %1109 = vmatprep.subr.mxu0 0.0
      %1110 = vmatpush1.msra.mxu0 0.0
      %1111 = vmatprep.subr.mxu0 0.0
      %1112 = vmatpush1.msra.mxu0 0.0
      %1113 = vmatprep.subr.mxu0 0.0
      %1114 = vmatpush1.msra.mxu0 0.0
      %1115 = vmatprep.subr.mxu0 0.0
      %1116 = vmatpush1.msra.mxu0 0.0
      %1117 = vmatprep.subr.mxu0 0.0
      %1118 = vmatpush1.msra.mxu0 0.0
      %1119 = vmatprep.subr.mxu0 0.0
      %1120 = vmatpush1.msra.mxu0 0.0
      %1121 = vmatprep.subr.mxu0 0.0
      %1122 = vmatpush1.msra.mxu0 0.0
      %1123 = vmatprep.subr.mxu0 0.0
      %1124 = vmatpush1.msra.mxu0 0.0
      %1125 = vmatprep.subr.mxu0 0.0
      %1126 = vmatpush1.msra.mxu0 0.0
      %1127 = vmatprep.subr.mxu0 0.0
      %1128 = vmatpush1.msra.mxu0 0.0
      %1129 = vmatprep.subr.mxu0 0.0
      %1130 = vmatpush1.msra.mxu0 0.0
      %1131 = vmatprep.subr.mxu0 0.0
      %1132 = vmatpush1.msra.mxu0 0.0
      %1133 = vmatprep.subr.mxu0 0.0
      %1134 = vmatpush1.msra.mxu0 0.0
      %1135 = vmatprep.subr.mxu0 0.0
      %1136 = vmatpush1.msra.mxu0 0.0
      %1137 = vmatprep.subr.mxu0 0.0
      %1138 = vmatpush1.msra.mxu0 0.0
      %1139 = vmatprep.subr.mxu0 0.0
      %1140 = vmatpush1.msra.mxu0 0.0
      %1141 = vmatprep.subr.mxu0 0.0
      %1142 = vmatpush1.msra.mxu0 0.0
      %1143 = vmatprep.subr.mxu0 0.0
      %1144 = vmatpush1.msra.mxu0 0.0
      %1145 = vmatprep.subr.mxu0 0.0
      %1146 = vmatpush1.msra.mxu0 0.0
      %1147 = vmatprep.subr.mxu0 0.0
      %1148 = vmatpush1.msra.mxu0 0.0
      %1149 = vmatprep.subr.mxu0 0.0
      %1150 = vmatpush1.msra.mxu0 0.0
      %1151 = vmatprep.subr.mxu0 0.0
      %1152 = vmatpush1.msra.mxu0 0.0
      %1153 = vmatprep.subr.mxu0 0.0
      %1154 = vmatpush1.msra.mxu0 0.0
      %1155 = vmatprep.subr.mxu0 0.0
      %1156 = vmatpush1.msra.mxu0 0.0
      %1157 = vmatprep.subr.mxu0 0.0
      %1158 = vmatpush1.msra.mxu0 0.0
      %1159 = vmatprep.subr.mxu0 0.0
      %1160 = vmatpush1.msra.mxu0 0.0
      %1161 = vmatprep.subr.mxu0 0.0
      %1162 = vmatpush1.msra.mxu0 0.0
      %1163 = vmatprep.subr.mxu0 0.0
      %1164 = vmatpush1.msra.mxu0 0.0
      %1165 = vmatprep.subr.mxu0 0.0
      %1166 = vmatpush1.msra.mxu0 0.0
      %1167 = vmatprep.mubr.f32.mxu0 0.0
      %1168 = vmatmul.mubr.f32.gmra.mrb[0].mxu0 %v629
      %v1169 = vpop.f32.mrb[0].mxu0
      %v1170 = vadd.f32 0.0, %v1169
      %v1171 = vpop.f32.mrb[0].mxu0
      %1172 = vmatprep.mubr.f32.mxu0 0.0
      %1173 = vmatmul.mubr.f32.gmra.mrb[0].mxu0 %v631
      %v1174 = vpop.f32.mrb[0].mxu0
      %v1175 = vadd.f32 0.0, %v1174
      %v1176 = vpop.f32.mrb[0].mxu0
      %1177 = vmatprep.mubr.f32.mxu0 0.0
      %1178 = vmatmul.mubr.f32.gmra.mrb[0].mxu0 %v633
      %v1179 = vpop.f32.mrb[0].mxu0
      %v1180 = vadd.f32 0.0, %v1179
      %v1181 = vpop.f32.mrb[0].mxu0
      %1182 = vmatprep.mubr.f32.mxu0 0.0
      %1183 = vmatmul.mubr.f32.gmra.mrb[0].mxu0 %v635
      %v1184 = vpop.f32.mrb[0].mxu0
      %v1185 = vadd.f32 0.0, %v1184
      %v1186 = vpop.f32.mrb[0].mxu0
      %1187 = vmatprep.mubr.f32.mxu0 0.0
      %1188 = vmatmul.mubr.f32.gmra.mrb[0].mxu0 %v637
      %v1189 = vpop.f32.mrb[0].mxu0
      %v1190 = vadd.f32 0.0, %v1189
      %v1191 = vpop.f32.mrb[0].mxu0
      %1192 = vmatprep.mubr.f32.mxu0 0.0
      %1193 = vmatmul.mubr.f32.gmra.mrb[0].mxu0 %v639
      %v1194 = vpop.f32.mrb[0].mxu0
      %v1195 = vadd.f32 0.0, %v1194
      %v1196 = vpop.f32.mrb[0].mxu0
      %1197 = vmatprep.mubr.f32.mxu0 0.0
      %1198 = vmatmul.mubr.f32.gmra.mrb[0].mxu0 %v641
      %v1199 = vpop.f32.mrb[0].mxu0
      %v1200 = vadd.f32 0.0, %v1199
      %v1201 = vpop.f32.mrb[0].mxu0
      %1202 = vmatprep.mubr.f32.mxu0 0.0
      %1203 = vmatmul.mubr.f32.gmra.mrb[0].mxu0 %v643
      %v1204 = vpop.f32.mrb[0].mxu0
      %v1205 = vadd.f32 0.0, %v1204
      %v1206 = vpop.f32.mrb[0].mxu0
      %1207 = vmatprep.mubr.f32.mxu0 0.0
      %1208 = vmatmul.mubr.f32.gmra.mrb[0].mxu0 %v645
      %v1209 = vpop.f32.mrb[0].mxu0
      %v1210 = vadd.f32 0.0, %v1209
      %v1211 = vpop.f32.mrb[0].mxu0
      %1212 = vmatprep.mubr.f32.mxu0 0.0
      %1213 = vmatmul.mubr.f32.gmra.mrb[0].mxu0 %v647
      %v1214 = vpop.f32.mrb[0].mxu0
      %v1215 = vadd.f32 0.0, %v1214
      %v1216 = vpop.f32.mrb[0].mxu0
      %1217 = vmatprep.mubr.f32.mxu0 0.0
      %1218 = vmatmul.mubr.f32.gmra.mrb[0].mxu0 %v1096
      %v1219 = vpop.f32.mrb[0].mxu0
      %v1220 = vadd.f32 0.0, %v1219
      %v1221 = vpop.f32.mrb[0].mxu0
      %1222 = vmatprep.mubr.f32.mxu0 0.0
      %1223 = vmatmul.mubr.f32.gmra.mrb[0].mxu0 %v1098
      %v1224 = vpop.f32.mrb[0].mxu0
      %v1225 = vadd.f32 0.0, %v1224
      %v1226 = vpop.f32.mrb[0].mxu0
      %1227 = vdwg.mxu0
      %v1228 = vadd.f32 %v1077, %v1170
      %v1229 = vadd.f32 %v1078, %v1175
      %v1230 = vadd.f32 %v1079, %v1180
      %v1231 = vadd.f32 %v1080, %v1185
      %v1232 = vadd.f32 %v1081, %v1190
      %v1233 = vadd.f32 %v1082, %v1195
      %v1234 = vadd.f32 %v1083, %v1200
      %v1235 = vadd.f32 %v1084, %v1205
      %v1236 = vadd.f32 %v1085, %v1210
      %v1237 = vadd.f32 %v1086, %v1215
      %v1238 = vadd.f32 %v1087, %v1220
      %v1239 = vadd.f32 %v1088, %v1225
      %s1240 = scalar_lea.vmem %s1, 24
      %v1241 = vld [vmem:[%s1240] sm:$0xf]
      %v1243 = vsel %vm286, %v231, 0
      %v1246 = vsel %vm286, %v232, 0
      %v1249 = vsel %vm311, %v1241, 0
      %1251 = vmatprep.subr.mxu0 0.0
      %1252 = vmatpush1.msra.mxu0 %v1249
      %1253 = vmatprep.subr.mxu0 0.0
      %1254 = vmatpush1.msra.mxu0 0.0
      %1255 = vmatprep.subr.mxu0 0.0
      %1256 = vmatpush1.msra.mxu0 0.0
      %1257 = vmatprep.subr.mxu0 0.0
      %1258 = vmatpush1.msra.mxu0 0.0
      %1259 = vmatprep.subr.mxu0 0.0
      %1260 = vmatpush1.msra.mxu0 0.0
      %1261 = vmatprep.subr.mxu0 0.0
      %1262 = vmatpush1.msra.mxu0 0.0
      %1263 = vmatprep.subr.mxu0 0.0
      %1264 = vmatpush1.msra.mxu0 0.0
      %1265 = vmatprep.subr.mxu0 0.0
      %1266 = vmatpush1.msra.mxu0 0.0
      %1267 = vmatprep.subr.mxu0 0.0
      %1268 = vmatpush1.msra.mxu0 0.0
      %1269 = vmatprep.subr.mxu0 0.0
      %1270 = vmatpush1.msra.mxu0 0.0
      %1271 = vmatprep.subr.mxu0 0.0
      %1272 = vmatpush1.msra.mxu0 0.0
      %1273 = vmatprep.subr.mxu0 0.0
      %1274 = vmatpush1.msra.mxu0 0.0
      %1275 = vmatprep.subr.mxu0 0.0
      %1276 = vmatpush1.msra.mxu0 0.0
      %1277 = vmatprep.subr.mxu0 0.0
      %1278 = vmatpush1.msra.mxu0 0.0
      %1279 = vmatprep.subr.mxu0 0.0
      %1280 = vmatpush1.msra.mxu0 0.0
      %1281 = vmatprep.subr.mxu0 0.0
      %1282 = vmatpush1.msra.mxu0 0.0
      %1283 = vmatprep.subr.mxu0 0.0
      %1284 = vmatpush1.msra.mxu0 0.0
      %1285 = vmatprep.subr.mxu0 0.0
      %1286 = vmatpush1.msra.mxu0 0.0
      %1287 = vmatprep.subr.mxu0 0.0
      %1288 = vmatpush1.msra.mxu0 0.0
      %1289 = vmatprep.subr.mxu0 0.0
      %1290 = vmatpush1.msra.mxu0 0.0
      %1291 = vmatprep.subr.mxu0 0.0
      %1292 = vmatpush1.msra.mxu0 0.0
      %1293 = vmatprep.subr.mxu0 0.0
      %1294 = vmatpush1.msra.mxu0 0.0
      %1295 = vmatprep.subr.mxu0 0.0
      %1296 = vmatpush1.msra.mxu0 0.0
      %1297 = vmatprep.subr.mxu0 0.0
      %1298 = vmatpush1.msra.mxu0 0.0
      %1299 = vmatprep.subr.mxu0 0.0
      %1300 = vmatpush1.msra.mxu0 0.0
      %1301 = vmatprep.subr.mxu0 0.0
      %1302 = vmatpush1.msra.mxu0 0.0
      %1303 = vmatprep.subr.mxu0 0.0
      %1304 = vmatpush1.msra.mxu0 0.0
      %1305 = vmatprep.subr.mxu0 0.0
      %1306 = vmatpush1.msra.mxu0 0.0
      %1307 = vmatprep.subr.mxu0 0.0
      %1308 = vmatpush1.msra.mxu0 0.0
      %1309 = vmatprep.subr.mxu0 0.0
      %1310 = vmatpush1.msra.mxu0 0.0
      %1311 = vmatprep.subr.mxu0 0.0
      %1312 = vmatpush1.msra.mxu0 0.0
      %1313 = vmatprep.subr.mxu0 0.0
      %1314 = vmatpush1.msra.mxu0 0.0
      %1315 = vmatprep.mubr.f32.mxu0 0.0
      %1316 = vmatmul.mubr.f32.gmra.mrb[0].mxu0 %v448
      %v1317 = vpop.f32.mrb[0].mxu0
      %v1318 = vadd.f32 0.0, %v1317
      %v1319 = vpop.f32.mrb[0].mxu0
      %1320 = vmatprep.mubr.f32.mxu0 0.0
      %1321 = vmatmul.mubr.f32.gmra.mrb[0].mxu0 %v450
      %v1322 = vpop.f32.mrb[0].mxu0
      %v1323 = vadd.f32 0.0, %v1322
      %v1324 = vpop.f32.mrb[0].mxu0
      %1325 = vmatprep.mubr.f32.mxu0 0.0
      %1326 = vmatmul.mubr.f32.gmra.mrb[0].mxu0 %v452
      %v1327 = vpop.f32.mrb[0].mxu0
      %v1328 = vadd.f32 0.0, %v1327
      %v1329 = vpop.f32.mrb[0].mxu0
      %1330 = vmatprep.mubr.f32.mxu0 0.0
      %1331 = vmatmul.mubr.f32.gmra.mrb[0].mxu0 %v454
      %v1332 = vpop.f32.mrb[0].mxu0
      %v1333 = vadd.f32 0.0, %v1332
      %v1334 = vpop.f32.mrb[0].mxu0
      %1335 = vmatprep.mubr.f32.mxu0 0.0
      %1336 = vmatmul.mubr.f32.gmra.mrb[0].mxu0 %v456
      %v1337 = vpop.f32.mrb[0].mxu0
      %v1338 = vadd.f32 0.0, %v1337
      %v1339 = vpop.f32.mrb[0].mxu0
      %1340 = vmatprep.mubr.f32.mxu0 0.0
      %1341 = vmatmul.mubr.f32.gmra.mrb[0].mxu0 %v458
      %v1342 = vpop.f32.mrb[0].mxu0
      %v1343 = vadd.f32 0.0, %v1342
      %v1344 = vpop.f32.mrb[0].mxu0
      %1345 = vmatprep.mubr.f32.mxu0 0.0
      %1346 = vmatmul.mubr.f32.gmra.mrb[0].mxu0 %v460
      %v1347 = vpop.f32.mrb[0].mxu0
      %v1348 = vadd.f32 0.0, %v1347
      %v1349 = vpop.f32.mrb[0].mxu0
      %1350 = vmatprep.mubr.f32.mxu0 0.0
      %1351 = vmatmul.mubr.f32.gmra.mrb[0].mxu0 %v462
      %v1352 = vpop.f32.mrb[0].mxu0
      %v1353 = vadd.f32 0.0, %v1352
      %v1354 = vpop.f32.mrb[0].mxu0
      %1355 = vmatprep.mubr.f32.mxu0 0.0
      %1356 = vmatmul.mubr.f32.gmra.mrb[0].mxu0 %v792
      %v1357 = vpop.f32.mrb[0].mxu0
      %v1358 = vadd.f32 0.0, %v1357
      %v1359 = vpop.f32.mrb[0].mxu0
      %1360 = vmatprep.mubr.f32.mxu0 0.0
      %1361 = vmatmul.mubr.f32.gmra.mrb[0].mxu0 %v795
      %v1362 = vpop.f32.mrb[0].mxu0
      %v1363 = vadd.f32 0.0, %v1362
      %v1364 = vpop.f32.mrb[0].mxu0
      %1365 = vmatprep.mubr.f32.mxu0 0.0
      %1366 = vmatmul.mubr.f32.gmra.mrb[0].mxu0 %v1243
      %v1367 = vpop.f32.mrb[0].mxu0
      %v1368 = vadd.f32 0.0, %v1367
      %v1369 = vpop.f32.mrb[0].mxu0
      %1370 = vmatprep.mubr.f32.mxu0 0.0
      %1371 = vmatmul.mubr.f32.gmra.mrb[0].mxu0 %v1246
      %v1372 = vpop.f32.mrb[0].mxu0
      %v1373 = vadd.f32 0.0, %v1372
      %v1374 = vpop.f32.mrb[0].mxu0
      %1375 = vdwg.mxu0
      %v1376 = vadd.f32 %v1228, %v1318
      %v1377 = vadd.f32 %v1229, %v1323
      %v1378 = vadd.f32 %v1230, %v1328
      %v1379 = vadd.f32 %v1231, %v1333
      %v1380 = vadd.f32 %v1232, %v1338
      %v1381 = vadd.f32 %v1233, %v1343
      %v1382 = vadd.f32 %v1234, %v1348
      %v1383 = vadd.f32 %v1235, %v1353
      %v1384 = vadd.f32 %v1236, %v1358
      %v1385 = vadd.f32 %v1237, %v1363
      %v1386 = vadd.f32 %v1238, %v1368
      %v1387 = vadd.f32 %v1239, %v1373
      %v1389 = vrot.slane %v231, 1
      %v1390 = vrot.slane %v232, 1
      %v1391 = vsel %vm253, %v1389, %v1390
      %v1392 = vrot.slane %v233, 1
      %v1393 = vsel %vm253, %v1390, %v1392
      %s1394 = scalar_lea.vmem %s1, 28
      %v1395 = vld [vmem:[%s1394] sm:$0xf]
      %v1396 = vsel %vm286, %v1391, 0
      %v1398 = vsel %vm286, %v1393, 0
      %v1401 = vsel %vm311, %v1395, 0
      %1403 = vmatprep.subr.mxu0 0.0
      %1404 = vmatpush1.msra.mxu0 %v1401
      %1405 = vmatprep.subr.mxu0 0.0
      %1406 = vmatpush1.msra.mxu0 0.0
      %1407 = vmatprep.subr.mxu0 0.0
      %1408 = vmatpush1.msra.mxu0 0.0
      %1409 = vmatprep.subr.mxu0 0.0
      %1410 = vmatpush1.msra.mxu0 0.0
      %1411 = vmatprep.subr.mxu0 0.0
      %1412 = vmatpush1.msra.mxu0 0.0
      %1413 = vmatprep.subr.mxu0 0.0
      %1414 = vmatpush1.msra.mxu0 0.0
      %1415 = vmatprep.subr.mxu0 0.0
      %1416 = vmatpush1.msra.mxu0 0.0
      %1417 = vmatprep.subr.mxu0 0.0
      %1418 = vmatpush1.msra.mxu0 0.0
      %1419 = vmatprep.subr.mxu0 0.0
      %1420 = vmatpush1.msra.mxu0 0.0
      %1421 = vmatprep.subr.mxu0 0.0
      %1422 = vmatpush1.msra.mxu0 0.0
      %1423 = vmatprep.subr.mxu0 0.0
      %1424 = vmatpush1.msra.mxu0 0.0
      %1425 = vmatprep.subr.mxu0 0.0
      %1426 = vmatpush1.msra.mxu0 0.0
      %1427 = vmatprep.subr.mxu0 0.0
      %1428 = vmatpush1.msra.mxu0 0.0
      %1429 = vmatprep.subr.mxu0 0.0
      %1430 = vmatpush1.msra.mxu0 0.0
      %1431 = vmatprep.subr.mxu0 0.0
      %1432 = vmatpush1.msra.mxu0 0.0
      %1433 = vmatprep.subr.mxu0 0.0
      %1434 = vmatpush1.msra.mxu0 0.0
      %1435 = vmatprep.subr.mxu0 0.0
      %1436 = vmatpush1.msra.mxu0 0.0
      %1437 = vmatprep.subr.mxu0 0.0
      %1438 = vmatpush1.msra.mxu0 0.0
      %1439 = vmatprep.subr.mxu0 0.0
      %1440 = vmatpush1.msra.mxu0 0.0
      %1441 = vmatprep.subr.mxu0 0.0
      %1442 = vmatpush1.msra.mxu0 0.0
      %1443 = vmatprep.subr.mxu0 0.0
      %1444 = vmatpush1.msra.mxu0 0.0
      %1445 = vmatprep.subr.mxu0 0.0
      %1446 = vmatpush1.msra.mxu0 0.0
      %1447 = vmatprep.subr.mxu0 0.0
      %1448 = vmatpush1.msra.mxu0 0.0
      %1449 = vmatprep.subr.mxu0 0.0
      %1450 = vmatpush1.msra.mxu0 0.0
      %1451 = vmatprep.subr.mxu0 0.0
      %1452 = vmatpush1.msra.mxu0 0.0
      %1453 = vmatprep.subr.mxu0 0.0
      %1454 = vmatpush1.msra.mxu0 0.0
      %1455 = vmatprep.subr.mxu0 0.0
      %1456 = vmatpush1.msra.mxu0 0.0
      %1457 = vmatprep.subr.mxu0 0.0
      %1458 = vmatpush1.msra.mxu0 0.0
      %1459 = vmatprep.subr.mxu0 0.0
      %1460 = vmatpush1.msra.mxu0 0.0
      %1461 = vmatprep.subr.mxu0 0.0
      %1462 = vmatpush1.msra.mxu0 0.0
      %1463 = vmatprep.subr.mxu0 0.0
      %1464 = vmatpush1.msra.mxu0 0.0
      %1465 = vmatprep.subr.mxu0 0.0
      %1466 = vmatpush1.msra.mxu0 0.0
      %1467 = vmatprep.mubr.f32.mxu0 0.0
      %1468 = vmatmul.mubr.f32.gmra.mrb[0].mxu0 %v295
      %v1469 = vpop.f32.mrb[0].mxu0
      %v1470 = vadd.f32 0.0, %v1469
      %v1471 = vpop.f32.mrb[0].mxu0
      %1472 = vmatprep.mubr.f32.mxu0 0.0
      %1473 = vmatmul.mubr.f32.gmra.mrb[0].mxu0 %v297
      %v1474 = vpop.f32.mrb[0].mxu0
      %v1475 = vadd.f32 0.0, %v1474
      %v1476 = vpop.f32.mrb[0].mxu0
      %1477 = vmatprep.mubr.f32.mxu0 0.0
      %1478 = vmatmul.mubr.f32.gmra.mrb[0].mxu0 %v299
      %v1479 = vpop.f32.mrb[0].mxu0
      %v1480 = vadd.f32 0.0, %v1479
      %v1481 = vpop.f32.mrb[0].mxu0
      %1482 = vmatprep.mubr.f32.mxu0 0.0
      %1483 = vmatmul.mubr.f32.gmra.mrb[0].mxu0 %v301
      %v1484 = vpop.f32.mrb[0].mxu0
      %v1485 = vadd.f32 0.0, %v1484
      %v1486 = vpop.f32.mrb[0].mxu0
      %1487 = vmatprep.mubr.f32.mxu0 0.0
      %1488 = vmatmul.mubr.f32.gmra.mrb[0].mxu0 %v303
      %v1489 = vpop.f32.mrb[0].mxu0
      %v1490 = vadd.f32 0.0, %v1489
      %v1491 = vpop.f32.mrb[0].mxu0
      %1492 = vmatprep.mubr.f32.mxu0 0.0
      %1493 = vmatmul.mubr.f32.gmra.mrb[0].mxu0 %v305
      %v1494 = vpop.f32.mrb[0].mxu0
      %v1495 = vadd.f32 0.0, %v1494
      %v1496 = vpop.f32.mrb[0].mxu0
      %1497 = vmatprep.mubr.f32.mxu0 0.0
      %1498 = vmatmul.mubr.f32.gmra.mrb[0].mxu0 %v307
      %v1499 = vpop.f32.mrb[0].mxu0
      %v1500 = vadd.f32 0.0, %v1499
      %v1501 = vpop.f32.mrb[0].mxu0
      %1502 = vmatprep.mubr.f32.mxu0 0.0
      %1503 = vmatmul.mubr.f32.gmra.mrb[0].mxu0 %v309
      %v1504 = vpop.f32.mrb[0].mxu0
      %v1505 = vadd.f32 0.0, %v1504
      %v1506 = vpop.f32.mrb[0].mxu0
      %1507 = vmatprep.mubr.f32.mxu0 0.0
      %1508 = vmatmul.mubr.f32.gmra.mrb[0].mxu0 %v945
      %v1509 = vpop.f32.mrb[0].mxu0
      %v1510 = vadd.f32 0.0, %v1509
      %v1511 = vpop.f32.mrb[0].mxu0
      %1512 = vmatprep.mubr.f32.mxu0 0.0
      %1513 = vmatmul.mubr.f32.gmra.mrb[0].mxu0 %v947
      %v1514 = vpop.f32.mrb[0].mxu0
      %v1515 = vadd.f32 0.0, %v1514
      %v1516 = vpop.f32.mrb[0].mxu0
      %1517 = vmatprep.mubr.f32.mxu0 0.0
      %1518 = vmatmul.mubr.f32.gmra.mrb[0].mxu0 %v1396
      %v1519 = vpop.f32.mrb[0].mxu0
      %v1520 = vadd.f32 0.0, %v1519
      %v1521 = vpop.f32.mrb[0].mxu0
      %1522 = vmatprep.mubr.f32.mxu0 0.0
      %1523 = vmatmul.mubr.f32.gmra.mrb[0].mxu0 %v1398
      %v1524 = vpop.f32.mrb[0].mxu0
      %v1525 = vadd.f32 0.0, %v1524
      %v1526 = vpop.f32.mrb[0].mxu0
      %1527 = vdwg.mxu0
      %v1528 = vadd.f32 %v1376, %v1470
      %v1529 = vadd.f32 %v1377, %v1475
      %v1530 = vadd.f32 %v1378, %v1480
      %v1531 = vadd.f32 %v1379, %v1485
      %v1532 = vadd.f32 %v1380, %v1490
      %v1533 = vadd.f32 %v1381, %v1495
      %v1534 = vadd.f32 %v1382, %v1500
      %v1535 = vadd.f32 %v1383, %v1505
      %v1536 = vadd.f32 %v1384, %v1510
      %v1537 = vadd.f32 %v1385, %v1515
      %v1538 = vadd.f32 %v1386, %v1520
      %v1539 = vadd.f32 %v1387, %v1525
      %v1540 = vrot.slane %v231, 2
      %v1541 = vrot.slane %v232, 2
      %v1542 = vsel %vm592, %v1540, %v1541
      %v1543 = vrot.slane %v233, 2
      %v1544 = vsel %vm592, %v1541, %v1543
      %s1545 = scalar_lea.vmem %s1, 32
      %v1546 = vld [vmem:[%s1545] sm:$0xf]
      %v1547 = vsel %vm286, %v1542, 0
      %v1549 = vsel %vm286, %v1544, 0
      %v1552 = vsel %vm311, %v1546, 0
      %1554 = vmatprep.subr.mxu0 0.0
      %1555 = vmatpush1.msra.mxu0 %v1552
      %1556 = vmatprep.subr.mxu0 0.0
      %1557 = vmatpush1.msra.mxu0 0.0
      %1558 = vmatprep.subr.mxu0 0.0
      %1559 = vmatpush1.msra.mxu0 0.0
      %1560 = vmatprep.subr.mxu0 0.0
      %1561 = vmatpush1.msra.mxu0 0.0
      %1562 = vmatprep.subr.mxu0 0.0
      %1563 = vmatpush1.msra.mxu0 0.0
      %1564 = vmatprep.subr.mxu0 0.0
      %1565 = vmatpush1.msra.mxu0 0.0
      %1566 = vmatprep.subr.mxu0 0.0
      %1567 = vmatpush1.msra.mxu0 0.0
      %1568 = vmatprep.subr.mxu0 0.0
      %1569 = vmatpush1.msra.mxu0 0.0
      %1570 = vmatprep.subr.mxu0 0.0
      %1571 = vmatpush1.msra.mxu0 0.0
      %1572 = vmatprep.subr.mxu0 0.0
      %1573 = vmatpush1.msra.mxu0 0.0
      %1574 = vmatprep.subr.mxu0 0.0
      %1575 = vmatpush1.msra.mxu0 0.0
      %1576 = vmatprep.subr.mxu0 0.0
      %1577 = vmatpush1.msra.mxu0 0.0
      %1578 = vmatprep.subr.mxu0 0.0
      %1579 = vmatpush1.msra.mxu0 0.0
      %1580 = vmatprep.subr.mxu0 0.0
      %1581 = vmatpush1.msra.mxu0 0.0
      %1582 = vmatprep.subr.mxu0 0.0
      %1583 = vmatpush1.msra.mxu0 0.0
      %1584 = vmatprep.subr.mxu0 0.0
      %1585 = vmatpush1.msra.mxu0 0.0
      %1586 = vmatprep.subr.mxu0 0.0
      %1587 = vmatpush1.msra.mxu0 0.0
      %1588 = vmatprep.subr.mxu0 0.0
      %1589 = vmatpush1.msra.mxu0 0.0
      %1590 = vmatprep.subr.mxu0 0.0
      %1591 = vmatpush1.msra.mxu0 0.0
      %1592 = vmatprep.subr.mxu0 0.0
      %1593 = vmatpush1.msra.mxu0 0.0
      %1594 = vmatprep.subr.mxu0 0.0
      %1595 = vmatpush1.msra.mxu0 0.0
      %1596 = vmatprep.subr.mxu0 0.0
      %1597 = vmatpush1.msra.mxu0 0.0
      %1598 = vmatprep.subr.mxu0 0.0
      %1599 = vmatpush1.msra.mxu0 0.0
      %1600 = vmatprep.subr.mxu0 0.0
      %1601 = vmatpush1.msra.mxu0 0.0
      %1602 = vmatprep.subr.mxu0 0.0
      %1603 = vmatpush1.msra.mxu0 0.0
      %1604 = vmatprep.subr.mxu0 0.0
      %1605 = vmatpush1.msra.mxu0 0.0
      %1606 = vmatprep.subr.mxu0 0.0
      %1607 = vmatpush1.msra.mxu0 0.0
      %1608 = vmatprep.subr.mxu0 0.0
      %1609 = vmatpush1.msra.mxu0 0.0
      %1610 = vmatprep.subr.mxu0 0.0
      %1611 = vmatpush1.msra.mxu0 0.0
      %1612 = vmatprep.subr.mxu0 0.0
      %1613 = vmatpush1.msra.mxu0 0.0
      %1614 = vmatprep.subr.mxu0 0.0
      %1615 = vmatpush1.msra.mxu0 0.0
      %1616 = vmatprep.subr.mxu0 0.0
      %1617 = vmatpush1.msra.mxu0 0.0
      %1618 = vmatprep.mubr.f32.mxu0 0.0
      %1619 = vmatmul.mubr.f32.gmra.mrb[0].mxu0 %v633
      %v1620 = vpop.f32.mrb[0].mxu0
      %v1621 = vadd.f32 0.0, %v1620
      %v1622 = vpop.f32.mrb[0].mxu0
      %1623 = vmatprep.mubr.f32.mxu0 0.0
      %1624 = vmatmul.mubr.f32.gmra.mrb[0].mxu0 %v635
      %v1625 = vpop.f32.mrb[0].mxu0
      %v1626 = vadd.f32 0.0, %v1625
      %v1627 = vpop.f32.mrb[0].mxu0
      %1628 = vmatprep.mubr.f32.mxu0 0.0
      %1629 = vmatmul.mubr.f32.gmra.mrb[0].mxu0 %v637
      %v1630 = vpop.f32.mrb[0].mxu0
      %v1631 = vadd.f32 0.0, %v1630
      %v1632 = vpop.f32.mrb[0].mxu0
      %1633 = vmatprep.mubr.f32.mxu0 0.0
      %1634 = vmatmul.mubr.f32.gmra.mrb[0].mxu0 %v639
      %v1635 = vpop.f32.mrb[0].mxu0
      %v1636 = vadd.f32 0.0, %v1635
      %v1637 = vpop.f32.mrb[0].mxu0
      %1638 = vmatprep.mubr.f32.mxu0 0.0
      %1639 = vmatmul.mubr.f32.gmra.mrb[0].mxu0 %v641
      %v1640 = vpop.f32.mrb[0].mxu0
      %v1641 = vadd.f32 0.0, %v1640
      %v1642 = vpop.f32.mrb[0].mxu0
      %1643 = vmatprep.mubr.f32.mxu0 0.0
      %1644 = vmatmul.mubr.f32.gmra.mrb[0].mxu0 %v643
      %v1645 = vpop.f32.mrb[0].mxu0
      %v1646 = vadd.f32 0.0, %v1645
      %v1647 = vpop.f32.mrb[0].mxu0
      %1648 = vmatprep.mubr.f32.mxu0 0.0
      %1649 = vmatmul.mubr.f32.gmra.mrb[0].mxu0 %v645
      %v1650 = vpop.f32.mrb[0].mxu0
      %v1651 = vadd.f32 0.0, %v1650
      %v1652 = vpop.f32.mrb[0].mxu0
      %1653 = vmatprep.mubr.f32.mxu0 0.0
      %1654 = vmatmul.mubr.f32.gmra.mrb[0].mxu0 %v647
      %v1655 = vpop.f32.mrb[0].mxu0
      %v1656 = vadd.f32 0.0, %v1655
      %v1657 = vpop.f32.mrb[0].mxu0
      %1658 = vmatprep.mubr.f32.mxu0 0.0
      %1659 = vmatmul.mubr.f32.gmra.mrb[0].mxu0 %v1096
      %v1660 = vpop.f32.mrb[0].mxu0
      %v1661 = vadd.f32 0.0, %v1660
      %v1662 = vpop.f32.mrb[0].mxu0
      %1663 = vmatprep.mubr.f32.mxu0 0.0
      %1664 = vmatmul.mubr.f32.gmra.mrb[0].mxu0 %v1098
      %v1665 = vpop.f32.mrb[0].mxu0
      %v1666 = vadd.f32 0.0, %v1665
      %v1667 = vpop.f32.mrb[0].mxu0
      %1668 = vmatprep.mubr.f32.mxu0 0.0
      %1669 = vmatmul.mubr.f32.gmra.mrb[0].mxu0 %v1547
      %v1670 = vpop.f32.mrb[0].mxu0
      %v1671 = vadd.f32 0.0, %v1670
      %v1672 = vpop.f32.mrb[0].mxu0
      %1673 = vmatprep.mubr.f32.mxu0 0.0
      %1674 = vmatmul.mubr.f32.gmra.mrb[0].mxu0 %v1549
      %v1675 = vpop.f32.mrb[0].mxu0
      %v1676 = vadd.f32 0.0, %v1675
      %v1677 = vpop.f32.mrb[0].mxu0
      %1678 = vdwg.mxu0
      %v1679 = vadd.f32 %v1528, %v1621
      %v1680 = vadd.f32 %v1529, %v1626
      %v1681 = vadd.f32 %v1530, %v1631
      %v1682 = vadd.f32 %v1531, %v1636
      %v1683 = vadd.f32 %v1532, %v1641
      %v1684 = vadd.f32 %v1533, %v1646
      %v1685 = vadd.f32 %v1534, %v1651
      %v1686 = vadd.f32 %v1535, %v1656
      %v1687 = vadd.f32 %v1536, %v1661
      %v1688 = vadd.f32 %v1537, %v1666
      %v1689 = vadd.f32 %v1538, %v1671
      %v1690 = vadd.f32 %v1539, %v1676
      %v1691 = vld [vmem:[%s2] sm:$0x1]
      %v1693 = vlaneseq
      %v1694 = vshrl.u32 %v1693, 7
      %v1695 = vsub.s32 0, %v1694
      %v1696 = vrot.slane %v1691, %v1695
      %v1698 = vadd.f32 %v1679, %v1696
      %v1699 = vadd.f32 %v1680, %v1696
      %v1700 = vadd.f32 %v1681, %v1696
      %v1701 = vadd.f32 %v1682, %v1696
      %v1702 = vadd.f32 %v1683, %v1696
      %v1703 = vadd.f32 %v1684, %v1696
      %v1704 = vadd.f32 %v1685, %v1696
      %v1705 = vadd.f32 %v1686, %v1696
      %v1706 = vadd.f32 %v1687, %v1696
      %v1707 = vadd.f32 %v1688, %v1696
      %v1708 = vadd.f32 %v1689, %v1696
      %v1709 = vadd.f32 %v1690, %v1696
      %vm1710 = vcmp.gt.f32.partialorder %v1698, 0.0
      %vm1711 = vcmp.gt.f32.partialorder %v1699, 0.0
      %vm1712 = vcmp.gt.f32.partialorder %v1700, 0.0
      %vm1713 = vcmp.gt.f32.partialorder %v1701, 0.0
      %vm1714 = vcmp.gt.f32.partialorder %v1702, 0.0
      %vm1715 = vcmp.gt.f32.partialorder %v1703, 0.0
      %vm1716 = vcmp.gt.f32.partialorder %v1704, 0.0
      %vm1717 = vcmp.gt.f32.partialorder %v1705, 0.0
      %vm1718 = vcmp.gt.f32.partialorder %v1706, 0.0
      %vm1719 = vcmp.gt.f32.partialorder %v1707, 0.0
      %vm1720 = vcmp.gt.f32.partialorder %v1708, 0.0
      %vm1721 = vcmp.gt.f32.partialorder %v1709, 0.0
      %v1722 = vmul.f32 %v1698, 0.1
      %v1723 = vmul.f32 %v1699, 0.1
      %v1724 = vmul.f32 %v1700, 0.1
      %v1725 = vmul.f32 %v1701, 0.1
      %v1726 = vmul.f32 %v1702, 0.1
      %v1727 = vmul.f32 %v1703, 0.1
      %v1728 = vmul.f32 %v1704, 0.1
      %v1729 = vmul.f32 %v1705, 0.1
      %v1730 = vmul.f32 %v1706, 0.1
      %v1731 = vmul.f32 %v1707, 0.1
      %v1732 = vmul.f32 %v1708, 0.1
      %v1733 = vmul.f32 %v1709, 0.1
      %v1734 = vsel %vm1710, %v1698, %v1722
      %v1735 = vsel %vm1711, %v1699, %v1723
      %v1736 = vsel %vm1712, %v1700, %v1724
      %v1737 = vsel %vm1713, %v1701, %v1725
      %v1738 = vsel %vm1714, %v1702, %v1726
      %v1739 = vsel %vm1715, %v1703, %v1727
      %v1740 = vsel %vm1716, %v1704, %v1728
      %v1741 = vsel %vm1717, %v1705, %v1729
      %v1742 = vsel %vm1718, %v1706, %v1730
      %v1743 = vsel %vm1719, %v1707, %v1731
      %v1744 = vsel %vm1720, %v1708, %v1732
      %v1745 = vsel %vm1721, %v1709, %v1733
      %1746 = vst [vmem:[%s208] sm:$0xff] %v1734
      %1747 = vst [vmem:[%s208 + $0x8] sm:$0xff] %v1735
      %1748 = vst [vmem:[%s208 + $0x10] sm:$0xff] %v1736
      %1749 = vst [vmem:[%s208 + $0x18] sm:$0xff] %v1737
      %1750 = vst [vmem:[%s208 + $0x20] sm:$0xff] %v1738
      %1751 = vst [vmem:[%s208 + $0x28] sm:$0xff] %v1739
      %1752 = vst [vmem:[%s208 + $0x30] sm:$0xff] %v1740
      %1753 = vst [vmem:[%s208 + $0x38] sm:$0xff] %v1741
      %1754 = vst [vmem:[%s208 + $0x40] sm:$0xff] %v1742
      %1755 = vst [vmem:[%s208 + $0x48] sm:$0xff] %v1743
      %1756 = vst [vmem:[%s208 + $0x50] sm:$0xff] %v1744
      %1757 = vst [vmem:[%s208 + $0x58] sm:$0xff] %v1745
      %s1758 = smul.u32 6, %s19
      %p1759 = scmp.lt.s32.totalorder %s18, 1
      %s1760 = scalar_select %p1759, %s18, 1
      %p1761 = scmp.lt.s32.totalorder %s1758, 17
      %s1762 = scalar_select %p1761, %s1758, 17
      %s1763 = smul.addr %s1762, 2
      %s1764 = smul.addr %s1760, 36
      %s1765 = sadd.s32 %s1763, %s1764
      %s1766 = smul.addr %s1765, 8
      %s1767 = scalar_lea.vmem %s3, %s1766
      // Predicated region
      $region33: #{cbl_forward.1} parent=31 // pred_check
        %p1768 = pneg %p116
      $region34: #{cbl_forward.1} parent=31 // pred_check_branch
        %1770 = sbr.rel (%p1768) target = $region36
      $region35: #{cbl_forward.1} parent=31 // pred_region
        %s1771 = smul.u32 6, %s19
      $region36: #{cbl_forward.1} parent=31 // pred_fallthru
        _
    $region32: #{cbl_forward.1} parent=5 // pred_fallthru
      _
    %p1772 = scmp.le.s32.totalorder 2, %s9
    // Predicated region
    $region37: #{cbl_forward.1} parent=5 // pred_check
      %p1773 = pneg %p1772
    $region38: #{cbl_forward.1} parent=5 // pred_check_branch
      %1775 = sbr.rel (%p1773) target = $region40
    $region39: #{cbl_forward.1} parent=5 // pred_region
      %s1776 = ssub.s32 %s9, 2
      // Predicated region
      $region41: #{cbl_forward.1} parent=39 // pred_check
        %p1777 = pneg %p122
      $region42: #{cbl_forward.1} parent=39 // pred_check_branch
        %1779 = sbr.rel (%p1777) target = $region44
      $region43: #{cbl_forward.1} parent=39 // pred_region
        %s1780 = smul.u32 6, %s21
        %p1781 = scmp.lt.s32.totalorder %s20, 1
        %s1782 = scalar_select %p1781, %s20, 1
        %p1783 = scmp.lt.s32.totalorder %s1780, 17
        %s1784 = scalar_select %p1783, %s1780, 17
        %s1785 = smul.addr %s1784, 2
        %s1786 = smul.addr %s1782, 36
        %s1787 = sadd.s32 %s1785, %s1786
        %s1788 = smul.addr %s1787, 8
        %s1789 = scalar_lea.vmem %s3, %s1788
      $region44: #{cbl_forward.1} parent=39 // pred_fallthru
        _
    $region40: #{cbl_forward.1} parent=5 // pred_fallthru
      _
  $region6: #{cbl_forward.1} parent=0 // loop_footer
    %s13 = sadd.s32 1, %s9
  $region7: #{cbl_forward.1} parent=0 // loop_footer_branch
    %8 = sbr.rel target = $region3
  $region8: #{cbl_forward.1} parent=0 // loop_exit
    _

</llo_original>
